<compile_context>
chip_gen: v7x
topology: tpu7x:2x2x1
jax: 0.10.0
libtpu: 0.0.40
codegen_flags: <defaults>
</compile_context>

<pallas_src>
import functools

import jax
import jax.numpy as jnp
from jax.experimental import pallas as pl
from jax.experimental.pallas import tpu as pltpu

# ----------------------------- model sizes -----------------------------------
ANNOTATION_SIZE = 4     # annotation feature dim
OUT_FEATS = 32          # GGNN hidden dim (>= annotation size)
N_STEPS = 3             # GGNN propagation steps
N_ETYPES = 2            # number of edge types
NUM_CLS = 5             # number of classes
N_NODES = 16            # total nodes in the batched graph
N_GRAPHS = 2            # graphs in the batch
LANES = 128


def _round_up(x, m):
    return (x + m - 1) // m * m


# ----------------------------- kernel -----------------------------------------
def ggnn_gc_kernel(blob_ref, preds_ref, feat_scr, *,
                   n_steps, n_etypes, d, a_dim, n_nodes, n_graphs_pad, num_cls,
                   o_nodes, o_adj, o_sg, o_wcomb, o_bcomb, o_whid, o_bhid,
                   o_gate, o_head):
    D, A, N, Gp, C, E = d, a_dim, n_nodes, n_graphs_pad, num_cls, n_etypes
    D3 = 3 * D

    # ---- loop-invariant loads from the single packed blob (8-aligned rows) ----
    w_comb = [blob_ref[o_wcomb + e * D:o_wcomb + (e + 1) * D, 0:D3]
              for e in range(E)]                              # E x (D, 3D)
    b_comb = blob_ref[o_bcomb:o_bcomb + N, 0:D3]              # (N, 3D)
    w_hid = blob_ref[o_whid:o_whid + D, 0:D3]                 # (D, 3D)
    b_hid = blob_ref[o_bhid:o_bhid + N, 0:D3]                 # (N, 3D)
    adjv = blob_ref[o_adj:o_adj + E * N, 0:N]                 # (E*N, N)

    # node features, lane-dense: [h0 | ann | 1 | 0...]  (N, 128)
    feat_scr[...] = blob_ref[o_nodes:o_nodes + N, :]
    h = feat_scr[:, 0:D]                                      # (N, D)

    # ---- GatedGraphConv: n_steps of (message, sum-agg, GRUCell) --------------
    # Per step: 1 adjacency matmul, E per-etype GRU-input matmuls (message
    # weights folded into the GRU input projection wrapper-side), 1 hidden
    # matmul (independent of the adjacency chain -> overlaps on the MXU).
    for _ in range(n_steps):
        t = jnp.dot(adjv, h, preferred_element_type=jnp.float32)      # (E*N, D)
        gi = b_comb
        for e in range(E):
            gi = gi + jnp.dot(t[e * N:(e + 1) * N, :], w_comb[e],
                              preferred_element_type=jnp.float32)     # (N, 3D)
        gh = jnp.dot(h, w_hid, preferred_element_type=jnp.float32) + b_hid
        rz = jax.nn.sigmoid(gi[:, 0:2 * D] + gh[:, 0:2 * D])
        r = rz[:, 0:D]
        z = rz[:, D:2 * D]
        n = jnp.tanh(gi[:, 2 * D:3 * D] + r * gh[:, 2 * D:3 * D])
        h = (1.0 - z) * n + z * h

    # ---- GlobalAttentionPooling over feat = [h | ann | 1] (lane-dense) -------
    feat_scr[:, 0:D] = h                                      # overwrite h lanes only
    feat = feat_scr[...]                                      # (N, 128), tail zero

    w_gate = blob_ref[o_gate:o_gate + 1, :]                   # (1, 128), zero-padded
    w_head = blob_ref[o_head:o_head + LANES, :]               # (128, 128), zero-padded
    S = blob_ref[o_sg:o_sg + Gp, 0:N]                         # (Gp, N)

    # gate row directly in (1, N) orientation: contract the feature (lane) dims.
    gate_row = jax.lax.dot_general(
        w_gate, feat, (((1,), (1,)), ((), ())),
        preferred_element_type=jnp.float32)                   # (1, N)

    mask = S > 0.5
    neg = jnp.float32(-1e30)
    masked = jnp.where(mask, gate_row, neg)                   # (Gp, N)
    m_g = jnp.max(masked, axis=-1, keepdims=True)             # (Gp, 1)
    # clamp keeps out-of-graph lanes finite before the select (tidier than inf)
    e_gn = jnp.where(mask, jnp.exp(jnp.minimum(gate_row - m_g, 0.0)), 0.0)
    denom = jnp.sum(e_gn, axis=-1, keepdims=True)             # (Gp, 1)
    # approx reciprocal = uniform positive per-graph scaling of the logits
    # (bias folded via the ones column scales identically) -> argmax-safe.
    alpha = e_gn * pl.reciprocal(jnp.maximum(denom, 1e-30), approx=True)
    readout = jnp.dot(alpha, feat, preferred_element_type=jnp.float32)   # (Gp, 128)

    # ---- classifier (+bias via ones column) and argmax over valid lanes ------
    logits = jnp.dot(readout, w_head, preferred_element_type=jnp.float32)  # (Gp, 128)
    lane = jax.lax.broadcasted_iota(jnp.int32, logits.shape, 1)
    logits = jnp.where(lane < C, logits, jnp.float32(-3e38))
    mx = jnp.max(logits, axis=-1, keepdims=True)
    cand = jnp.where(logits == mx, lane, LANES)
    pred_col = jnp.min(cand, axis=-1, keepdims=True)          # (Gp, 1)
    preds_ref[...] = jnp.broadcast_to(pred_col, (Gp, LANES))  # one unmasked vst
    # TODO(synk): CrossEntropyLoss branch (labels is not None) not implemented;
    # forward with labels=None returns preds only.


# ----------------------------- wrapper (jitted) --------------------------------
def _graph_cls_ggnn_impl(annotation, adj, S, params):
    N, A = annotation.shape
    D = OUT_FEATS
    G = S.shape[0]
    C = NUM_CLS
    E = adj.shape[0]
    D3 = 3 * D
    F = D + A + 1
    G_pad = _round_up(G, 8)

    # GRU weights concatenated per gate order [reset, update, new]
    wi_all = jnp.concatenate([params["wih"][k] for k in range(3)], axis=1)   # (D, 3D)
    wh_all = jnp.concatenate([params["whh"][k] for k in range(3)], axis=1)   # (D, 3D)
    bi_all = jnp.concatenate([params["bih"][k] for k in range(3)], axis=1)   # (1, 3D)
    bh_all = jnp.concatenate([params["bhh"][k] for k in range(3)], axis=1)   # (1, 3D)

    # fold per-etype message weights/biases into the GRU input projection:
    #   a = sum_e adj_e @ (h @ we_e + be_e)
    #   gi = a @ Wi_all + bi_all = sum_e (adj_e @ h) @ (we_e @ Wi_all) + b_comb
    we_v = jnp.concatenate([params["we"][e] for e in range(E)], axis=0)      # (E*D, D)
    w_comb = we_v @ wi_all                                                   # (E*D, 3D)
    deg = jnp.sum(adj, axis=2)                                               # (E, N)
    deg_bias = sum(deg[e][:, None] * params["be"][e] for e in range(E))      # (N, D)
    b_comb = deg_bias @ wi_all + bi_all                                      # (N, 3D)
    bh_b = jnp.broadcast_to(bh_all, (N, D3))                                 # (N, 3D)

    adj_vcat = adj.reshape(E * N, N)                                         # (E*N, N)

    # pooling gate / output head with bias folded via an appended ones column
    w_gate = jnp.concatenate(
        [params["gwh"][:, 0], params["gwa"][:, 0], params["gb"][0]], axis=0)  # (F,)
    w_head = jnp.concatenate([params["owh"], params["owa"], params["ob"]], axis=0)  # (F, C)

    # node region: [h0 | ann | 1 | zeros] laid out lane-dense to 128 lanes
    nodes = jnp.zeros((N, LANES), jnp.float32)
    nodes = nodes.at[:, 0:A].set(annotation)         # h0 = [ann | zeros(D-A)]
    nodes = nodes.at[:, D:D + A].set(annotation)
    nodes = nodes.at[:, D + A].set(1.0)

    # ------- pack EVERYTHING into one (rows, 128) blob: single prologue DMA ----
    o_nodes = 0
    o_adj = _round_up(o_nodes + N, 8)
    o_sg = _round_up(o_adj + E * N, 8)
    o_wcomb = _round_up(o_sg + G_pad, 8)
    o_bcomb = _round_up(o_wcomb + E * D, 8)
    o_whid = _round_up(o_bcomb + N, 8)
    o_bhid = _round_up(o_whid + D, 8)
    o_gate = _round_up(o_bhid + N, 8)
    o_head = _round_up(o_gate + 1, 8)
    n_rows = _round_up(o_head + LANES, 8)

    blob = jnp.zeros((n_rows, LANES), jnp.float32)
    blob = blob.at[o_nodes:o_nodes + N, :].set(nodes)
    blob = blob.at[o_adj:o_adj + E * N, 0:N].set(adj_vcat)
    blob = blob.at[o_sg:o_sg + G, 0:N].set(S)
    blob = blob.at[o_wcomb:o_wcomb + E * D, 0:D3].set(w_comb)
    blob = blob.at[o_bcomb:o_bcomb + N, 0:D3].set(b_comb)
    blob = blob.at[o_whid:o_whid + D, 0:D3].set(wh_all)
    blob = blob.at[o_bhid:o_bhid + N, 0:D3].set(bh_b)
    blob = blob.at[o_gate, 0:F].set(w_gate)
    blob = blob.at[o_head:o_head + F, 0:C].set(w_head)

    kernel = functools.partial(
        ggnn_gc_kernel,
        n_steps=N_STEPS, n_etypes=E, d=D, a_dim=A,
        n_nodes=N, n_graphs_pad=G_pad, num_cls=C,
        o_nodes=o_nodes, o_adj=o_adj, o_sg=o_sg, o_wcomb=o_wcomb,
        o_bcomb=o_bcomb, o_whid=o_whid, o_bhid=o_bhid,
        o_gate=o_gate, o_head=o_head)

    out = pl.pallas_call(
        kernel,
        out_shape=jax.ShapeDtypeStruct((G_pad, LANES), jnp.int32),
        grid=(1,),
        in_specs=[pl.BlockSpec((n_rows, LANES), lambda i: (0, 0))],
        out_specs=pl.BlockSpec((G_pad, LANES), lambda i: (0, 0)),
        scratch_shapes=[pltpu.VMEM((N, LANES), jnp.float32)],
        compiler_params=pltpu.CompilerParams(
            dimension_semantics=("arbitrary",)),
    )(blob)
    return out[:G, 0]


# whole forward (packing + kernel) compiled once; packing ops are fused by XLA
graph_cls_ggnn = jax.jit(_graph_cls_ggnn_impl)


# ----------------------------- reference (pure JAX, unfused) ------------------
def reference_forward(annotation, adj, S, params):
    N, A = annotation.shape
    D = OUT_FEATS
    h = jnp.concatenate([annotation, jnp.zeros((N, D - A), jnp.float32)], -1)
    for _ in range(N_STEPS):
        a = jnp.zeros_like(h)
        for e in range(N_ETYPES):
            msg = h @ params["we"][e] + params["be"][e]
            a = a + adj[e] @ msg
        r = jax.nn.sigmoid(a @ params["wih"][0] + params["bih"][0]
                           + h @ params["whh"][0] + params["bhh"][0])
        z = jax.nn.sigmoid(a @ params["wih"][1] + params["bih"][1]
                           + h @ params["whh"][1] + params["bhh"][1])
        n = jnp.tanh(a @ params["wih"][2] + params["bih"][2]
                     + r * (h @ params["whh"][2] + params["bhh"][2]))
        h = (1.0 - z) * n + z * h
    feat = jnp.concatenate([h, annotation], -1)
    gate = (h @ params["gwh"] + annotation @ params["gwa"] + params["gb"])[:, 0]
    masked = jnp.where(S > 0.5, gate[None, :], -1e30)
    m_g = jnp.max(masked, -1, keepdims=True)
    e_gn = jnp.where(S > 0.5, jnp.exp(gate[None, :] - m_g), 0.0)
    alpha = e_gn / jnp.sum(e_gn, -1, keepdims=True)
    readout = alpha @ feat
    w_out = jnp.concatenate([params["owh"], params["owa"]], 0)
    logits = readout @ w_out + params["ob"]
    return jnp.argmax(logits, -1).astype(jnp.int32)


# ----------------------------- main -------------------------------------------
if __name__ == "__main__":
    key = jax.random.PRNGKey(0)
    D, A, C, N, G, E = OUT_FEATS, ANNOTATION_SIZE, NUM_CLS, N_NODES, N_GRAPHS, N_ETYPES

    keys = jax.random.split(key, 16)
    u = lambda k, shape, fan: jax.random.uniform(
        k, shape, jnp.float32, -1.0 / jnp.sqrt(fan), 1.0 / jnp.sqrt(fan))

    params = {
        # GatedGraphConv per-etype linears (stored pre-transposed: y = x @ W + b)
        "we":  u(keys[0], (E, D, D), D),
        "be":  u(keys[1], (E, 1, D), D),
        # GRUCell weights, order [reset, update, new], pre-transposed
        "wih": u(keys[2], (3, D, D), D),
        "whh": u(keys[3], (3, D, D), D),
        "bih": u(keys[4], (3, 1, D), D),
        "bhh": u(keys[5], (3, 1, D), D),
        # pooling gate nn: Linear(A + D, 1); split into h-part and annotation-part
        "gwh": u(keys[6], (D, 1), D + A),
        "gwa": u(keys[7], (A, 1), D + A),
        "gb":  u(keys[8], (1, 1), D + A),
        # output layer: Linear(A + D, num_cls); split likewise
        "owh": u(keys[9], (D, C), D + A),
        "owa": u(keys[10], (A, C), D + A),
        "ob":  u(keys[11], (1, C), D + A),
    }

    # deterministic node annotations
    annotation = jax.random.uniform(keys[12], (N, A), jnp.float32)

    # two graphs of 8 nodes each; ring edges of etype 0 and reverse ring of etype 1
    nodes_per_graph = N // G
    adj_list = [[[0.0] * N for _ in range(N)] for _ in range(E)]
    s_list = [[0.0] * N for _ in range(G)]
    for g in range(G):
        base = g * nodes_per_graph
        for i in range(nodes_per_graph):
            src = base + i
            dst = base + (i + 1) % nodes_per_graph
            adj_list[0][dst][src] = 1.0   # etype 0: src -> dst
            adj_list[1][src][dst] = 1.0   # etype 1: reverse edge
            s_list[g][base + i] = 1.0
    adj = jnp.array(adj_list, jnp.float32)        # (E, N, N)
    S = jnp.array(s_list, jnp.float32)            # (G, N) graph membership

    preds = graph_cls_ggnn(annotation, adj, S, params)
    preds = jax.block_until_ready(preds)

    ref_preds = reference_forward(annotation, adj, S, params)
    assert preds.shape == (G,)
    assert jnp.array_equal(preds, ref_preds), (preds, ref_preds)

    print("KERNEL_OK")
</pallas_src>

<mosaic_0001>
module attributes {stable_mosaic.version = 11 : i64} {
  func.func @ggnn_gc_kernel(%arg0: i32, %arg1: memref<320x128xf32, #tpu.memory_space<vmem>>, %arg2: memref<8x128xi32, #tpu.memory_space<vmem>>, %arg3: memref<16x128xf32, #tpu.memory_space<vmem>>) attributes {dimension_semantics = [#tpu.dimension_semantics<arbitrary>], iteration_bounds = array<i64: 1>, scalar_prefetch = 0 : i64, scratch_operands = 1 : i64, tpu.core_type = #tpu.core_type<tc>, window_params = [{pipeline_mode = #tpu.pipeline_mode<synchronous>, transform_indices = @transform_0, window_bounds = array<i64: 320, 128>}, {pipeline_mode = #tpu.pipeline_mode<synchronous>, transform_indices = @transform_1, window_bounds = array<i64: 8, 128>}]} {
    %c56 = arith.constant 56 : index
    %c0 = arith.constant 0 : index
    %0 = vector.load %arg1[%c56, %c0] : memref<320x128xf32, #tpu.memory_space<vmem>>, vector<32x96xf32>
    %c88 = arith.constant 88 : index
    %c0_0 = arith.constant 0 : index
    %1 = vector.load %arg1[%c88, %c0_0] : memref<320x128xf32, #tpu.memory_space<vmem>>, vector<32x96xf32>
    %c120 = arith.constant 120 : index
    %c0_1 = arith.constant 0 : index
    %2 = vector.load %arg1[%c120, %c0_1] : memref<320x128xf32, #tpu.memory_space<vmem>>, vector<16x96xf32>
    %c136 = arith.constant 136 : index
    %c0_2 = arith.constant 0 : index
    %3 = vector.load %arg1[%c136, %c0_2] : memref<320x128xf32, #tpu.memory_space<vmem>>, vector<32x96xf32>
    %c168 = arith.constant 168 : index
    %c0_3 = arith.constant 0 : index
    %4 = vector.load %arg1[%c168, %c0_3] : memref<320x128xf32, #tpu.memory_space<vmem>>, vector<16x96xf32>
    %c16 = arith.constant 16 : index
    %c0_4 = arith.constant 0 : index
    %5 = vector.load %arg1[%c16, %c0_4] : memref<320x128xf32, #tpu.memory_space<vmem>>, vector<32x16xf32>
    %c0_5 = arith.constant 0 : index
    %c0_6 = arith.constant 0 : index
    %6 = vector.load %arg1[%c0_5, %c0_6] : memref<320x128xf32, #tpu.memory_space<vmem>>, vector<16x128xf32>
    %c0_7 = arith.constant 0 : index
    %c0_8 = arith.constant 0 : index
    %7 = vector.load %arg3[%c0_7, %c0_8] : memref<16x128xf32, #tpu.memory_space<vmem>>, vector<16x128xf32>
    tpu.vector_store %arg3[%c0_7, %c0_8], %6 {strides = array<i32>} : memref<16x128xf32, #tpu.memory_space<vmem>>, vector<16x128xf32>,
    %c0_9 = arith.constant 0 : index
    %c0_10 = arith.constant 0 : index
    %8 = vector.load %arg3[%c0_9, %c0_10] : memref<16x128xf32, #tpu.memory_space<vmem>>, vector<16x32xf32>
    %cst = arith.constant dense<0.000000e+00> : vector<32x32xf32>
    %9 = tpu.matmul %5, %8, %cst {dimension_numbers = #tpu.dot_dimension_numbers<[1], [0], [0], [1], [0, 0, 1, 1], [], []>} : vector<32x16xf32>, vector<16x32xf32>, vector<32x32xf32> -> vector<32x32xf32>
    %10 = vector.extract_strided_slice %9 {offsets = [0, 0], sizes = [16, 32], strides = [1, 1]} : vector<32x32xf32> to vector<16x32xf32>
    %cst_11 = arith.constant dense<0.000000e+00> : vector<16x96xf32>
    %11 = tpu.matmul %10, %0, %cst_11 {dimension_numbers = #tpu.dot_dimension_numbers<[1], [0], [0], [1], [0, 0, 1, 1], [], []>} : vector<16x32xf32>, vector<32x96xf32>, vector<16x96xf32> -> vector<16x96xf32>
    %12 = arith.addf %2, %11 : vector<16x96xf32>
    %13 = vector.extract_strided_slice %9 {offsets = [16, 0], sizes = [16, 32], strides = [1, 1]} : vector<32x32xf32> to vector<16x32xf32>
    %cst_12 = arith.constant dense<0.000000e+00> : vector<16x96xf32>
    %14 = tpu.matmul %13, %1, %cst_12 {dimension_numbers = #tpu.dot_dimension_numbers<[1], [0], [0], [1], [0, 0, 1, 1], [], []>} : vector<16x32xf32>, vector<32x96xf32>, vector<16x96xf32> -> vector<16x96xf32>
    %15 = arith.addf %12, %14 : vector<16x96xf32>
    %cst_13 = arith.constant dense<0.000000e+00> : vector<16x96xf32>
    %16 = tpu.matmul %8, %3, %cst_13 {dimension_numbers = #tpu.dot_dimension_numbers<[1], [0], [0], [1], [0, 0, 1, 1], [], []>} : vector<16x32xf32>, vector<32x96xf32>, vector<16x96xf32> -> vector<16x96xf32>
    %17 = arith.addf %16, %4 : vector<16x96xf32>
    %18 = vector.extract_strided_slice %15 {offsets = [0, 0], sizes = [16, 64], strides = [1, 1]} : vector<16x96xf32> to vector<16x64xf32>
    %19 = vector.extract_strided_slice %17 {offsets = [0, 0], sizes = [16, 64], strides = [1, 1]} : vector<16x96xf32> to vector<16x64xf32>
    %20 = arith.addf %18, %19 : vector<16x64xf32>
    %21 = arith.negf %20 : vector<16x64xf32>
    %22 = math.exp %21 : vector<16x64xf32>
    %cst_14 = arith.constant 1.000000e+00 : f32
    %23 = vector.broadcast %cst_14 : f32 to vector<16x64xf32>
    %24 = arith.addf %23, %22 : vector<16x64xf32>
    %25 = arith.divf %23, %24 : vector<16x64xf32>
    %26 = vector.extract_strided_slice %25 {offsets = [0, 0], sizes = [16, 32], strides = [1, 1]} : vector<16x64xf32> to vector<16x32xf32>
    %27 = vector.extract_strided_slice %25 {offsets = [0, 32], sizes = [16, 32], strides = [1, 1]} : vector<16x64xf32> to vector<16x32xf32>
    %28 = vector.extract_strided_slice %15 {offsets = [0, 64], sizes = [16, 32], strides = [1, 1]} : vector<16x96xf32> to vector<16x32xf32>
    %29 = vector.extract_strided_slice %17 {offsets = [0, 64], sizes = [16, 32], strides = [1, 1]} : vector<16x96xf32> to vector<16x32xf32>
    %30 = arith.mulf %26, %29 : vector<16x32xf32>
    %31 = arith.addf %28, %30 : vector<16x32xf32>
    %32 = math.tanh %31 : vector<16x32xf32>
    %cst_15 = arith.constant 1.000000e+00 : f32
    %33 = vector.broadcast %cst_15 : f32 to vector<16x32xf32>
    %34 = arith.subf %33, %27 : vector<16x32xf32>
    %35 = arith.mulf %34, %32 : vector<16x32xf32>
    %36 = arith.mulf %27, %8 : vector<16x32xf32>
    %37 = arith.addf %35, %36 : vector<16x32xf32>
    %cst_16 = arith.constant dense<0.000000e+00> : vector<32x32xf32>
    %38 = tpu.matmul %5, %37, %cst_16 {dimension_numbers = #tpu.dot_dimension_numbers<[1], [0], [0], [1], [0, 0, 1, 1], [], []>} : vector<32x16xf32>, vector<16x32xf32>, vector<32x32xf32> -> vector<32x32xf32>
    %39 = vector.extract_strided_slice %38 {offsets = [0, 0], sizes = [16, 32], strides = [1, 1]} : vector<32x32xf32> to vector<16x32xf32>
    %cst_17 = arith.constant dense<0.000000e+00> : vector<16x96xf32>
    %40 = tpu.matmul %39, %0, %cst_17 {dimension_numbers = #tpu.dot_dimension_numbers<[1], [0], [0], [1], [0, 0, 1, 1], [], []>} : vector<16x32xf32>, vector<32x96xf32>, vector<16x96xf32> -> vector<16x96xf32>
    %41 = arith.addf %2, %40 : vector<16x96xf32>
    %42 = vector.extract_strided_slice %38 {offsets = [16, 0], sizes = [16, 32], strides = [1, 1]} : vector<32x32xf32> to vector<16x32xf32>
    %cst_18 = arith.constant dense<0.000000e+00> : vector<16x96xf32>
    %43 = tpu.matmul %42, %1, %cst_18 {dimension_numbers = #tpu.dot_dimension_numbers<[1], [0], [0], [1], [0, 0, 1, 1], [], []>} : vector<16x32xf32>, vector<32x96xf32>, vector<16x96xf32> -> vector<16x96xf32>
    %44 = arith.addf %41, %43 : vector<16x96xf32>
    %cst_19 = arith.constant dense<0.000000e+00> : vector<16x96xf32>
    %45 = tpu.matmul %37, %3, %cst_19 {dimension_numbers = #tpu.dot_dimension_numbers<[1], [0], [0], [1], [0, 0, 1, 1], [], []>} : vector<16x32xf32>, vector<32x96xf32>, vector<16x96xf32> -> vector<16x96xf32>
    %46 = arith.addf %45, %4 : vector<16x96xf32>
    %47 = vector.extract_strided_slice %44 {offsets = [0, 0], sizes = [16, 64], strides = [1, 1]} : vector<16x96xf32> to vector<16x64xf32>
    %48 = vector.extract_strided_slice %46 {offsets = [0, 0], sizes = [16, 64], strides = [1, 1]} : vector<16x96xf32> to vector<16x64xf32>
    %49 = arith.addf %47, %48 : vector<16x64xf32>
    %50 = arith.negf %49 : vector<16x64xf32>
    %51 = math.exp %50 : vector<16x64xf32>
    %cst_20 = arith.constant 1.000000e+00 : f32
    %52 = vector.broadcast %cst_20 : f32 to vector<16x64xf32>
    %53 = arith.addf %52, %51 : vector<16x64xf32>
    %54 = arith.divf %52, %53 : vector<16x64xf32>
    %55 = vector.extract_strided_slice %54 {offsets = [0, 0], sizes = [16, 32], strides = [1, 1]} : vector<16x64xf32> to vector<16x32xf32>
    %56 = vector.extract_strided_slice %54 {offsets = [0, 32], sizes = [16, 32], strides = [1, 1]} : vector<16x64xf32> to vector<16x32xf32>
    %57 = vector.extract_strided_slice %44 {offsets = [0, 64], sizes = [16, 32], strides = [1, 1]} : vector<16x96xf32> to vector<16x32xf32>
    %58 = vector.extract_strided_slice %46 {offsets = [0, 64], sizes = [16, 32], strides = [1, 1]} : vector<16x96xf32> to vector<16x32xf32>
    %59 = arith.mulf %55, %58 : vector<16x32xf32>
    %60 = arith.addf %57, %59 : vector<16x32xf32>
    %61 = math.tanh %60 : vector<16x32xf32>
    %cst_21 = arith.constant 1.000000e+00 : f32
    %62 = vector.broadcast %cst_21 : f32 to vector<16x32xf32>
    %63 = arith.subf %62, %56 : vector<16x32xf32>
    %64 = arith.mulf %63, %61 : vector<16x32xf32>
    %65 = arith.mulf %56, %37 : vector<16x32xf32>
    %66 = arith.addf %64, %65 : vector<16x32xf32>
    %cst_22 = arith.constant dense<0.000000e+00> : vector<32x32xf32>
    %67 = tpu.matmul %5, %66, %cst_22 {dimension_numbers = #tpu.dot_dimension_numbers<[1], [0], [0], [1], [0, 0, 1, 1], [], []>} : vector<32x16xf32>, vector<16x32xf32>, vector<32x32xf32> -> vector<32x32xf32>
    %68 = vector.extract_strided_slice %67 {offsets = [0, 0], sizes = [16, 32], strides = [1, 1]} : vector<32x32xf32> to vector<16x32xf32>
    %cst_23 = arith.constant dense<0.000000e+00> : vector<16x96xf32>
    %69 = tpu.matmul %68, %0, %cst_23 {dimension_numbers = #tpu.dot_dimension_numbers<[1], [0], [0], [1], [0, 0, 1, 1], [], []>} : vector<16x32xf32>, vector<32x96xf32>, vector<16x96xf32> -> vector<16x96xf32>
    %70 = arith.addf %2, %69 : vector<16x96xf32>
    %71 = vector.extract_strided_slice %67 {offsets = [16, 0], sizes = [16, 32], strides = [1, 1]} : vector<32x32xf32> to vector<16x32xf32>
    %cst_24 = arith.constant dense<0.000000e+00> : vector<16x96xf32>
    %72 = tpu.matmul %71, %1, %cst_24 {dimension_numbers = #tpu.dot_dimension_numbers<[1], [0], [0], [1], [0, 0, 1, 1], [], []>} : vector<16x32xf32>, vector<32x96xf32>, vector<16x96xf32> -> vector<16x96xf32>
    %73 = arith.addf %70, %72 : vector<16x96xf32>
    %cst_25 = arith.constant dense<0.000000e+00> : vector<16x96xf32>
    %74 = tpu.matmul %66, %3, %cst_25 {dimension_numbers = #tpu.dot_dimension_numbers<[1], [0], [0], [1], [0, 0, 1, 1], [], []>} : vector<16x32xf32>, vector<32x96xf32>, vector<16x96xf32> -> vector<16x96xf32>
    %75 = arith.addf %74, %4 : vector<16x96xf32>
    %76 = vector.extract_strided_slice %73 {offsets = [0, 0], sizes = [16, 64], strides = [1, 1]} : vector<16x96xf32> to vector<16x64xf32>
    %77 = vector.extract_strided_slice %75 {offsets = [0, 0], sizes = [16, 64], strides = [1, 1]} : vector<16x96xf32> to vector<16x64xf32>
    %78 = arith.addf %76, %77 : vector<16x64xf32>
    %79 = arith.negf %78 : vector<16x64xf32>
    %80 = math.exp %79 : vector<16x64xf32>
    %cst_26 = arith.constant 1.000000e+00 : f32
    %81 = vector.broadcast %cst_26 : f32 to vector<16x64xf32>
    %82 = arith.addf %81, %80 : vector<16x64xf32>
    %83 = arith.divf %81, %82 : vector<16x64xf32>
    %84 = vector.extract_strided_slice %83 {offsets = [0, 0], sizes = [16, 32], strides = [1, 1]} : vector<16x64xf32> to vector<16x32xf32>
    %85 = vector.extract_strided_slice %83 {offsets = [0, 32], sizes = [16, 32], strides = [1, 1]} : vector<16x64xf32> to vector<16x32xf32>
    %86 = vector.extract_strided_slice %73 {offsets = [0, 64], sizes = [16, 32], strides = [1, 1]} : vector<16x96xf32> to vector<16x32xf32>
    %87 = vector.extract_strided_slice %75 {offsets = [0, 64], sizes = [16, 32], strides = [1, 1]} : vector<16x96xf32> to vector<16x32xf32>
    %88 = arith.mulf %84, %87 : vector<16x32xf32>
    %89 = arith.addf %86, %88 : vector<16x32xf32>
    %90 = math.tanh %89 : vector<16x32xf32>
    %cst_27 = arith.constant 1.000000e+00 : f32
    %91 = vector.broadcast %cst_27 : f32 to vector<16x32xf32>
    %92 = arith.subf %91, %85 : vector<16x32xf32>
    %93 = arith.mulf %92, %90 : vector<16x32xf32>
    %94 = arith.mulf %85, %66 : vector<16x32xf32>
    %95 = arith.addf %93, %94 : vector<16x32xf32>
    %c0_28 = arith.constant 0 : index
    %c0_29 = arith.constant 0 : index
    %96 = vector.load %arg3[%c0_28, %c0_29] : memref<16x128xf32, #tpu.memory_space<vmem>>, vector<16x32xf32>
    tpu.vector_store %arg3[%c0_28, %c0_29], %95 {strides = array<i32>} : memref<16x128xf32, #tpu.memory_space<vmem>>, vector<16x32xf32>,
    %c0_30 = arith.constant 0 : index
    %c0_31 = arith.constant 0 : index
    %97 = vector.load %arg3[%c0_30, %c0_31] : memref<16x128xf32, #tpu.memory_space<vmem>>, vector<16x128xf32>
    %c184 = arith.constant 184 : index
    %c0_32 = arith.constant 0 : index
    %98 = vector.load %arg1[%c184, %c0_32] : memref<320x128xf32, #tpu.memory_space<vmem>>, vector<1x128xf32>
    %c192 = arith.constant 192 : index
    %c0_33 = arith.constant 0 : index
    %99 = vector.load %arg1[%c192, %c0_33] : memref<320x128xf32, #tpu.memory_space<vmem>>, vector<128x128xf32>
    %c48 = arith.constant 48 : index
    %c0_34 = arith.constant 0 : index
    %100 = vector.load %arg1[%c48, %c0_34] : memref<320x128xf32, #tpu.memory_space<vmem>>, vector<8x16xf32>
    %cst_35 = arith.constant dense<0.000000e+00> : vector<1x16xf32>
    %101 = tpu.matmul %98, %97, %cst_35 {dimension_numbers = #tpu.dot_dimension_numbers<[1], [1], [0], [0], [0, 0, 1, 0], [], []>} : vector<1x128xf32>, vector<16x128xf32>, vector<1x16xf32> -> vector<1x16xf32>
    %cst_36 = arith.constant 5.000000e-01 : f32
    %102 = vector.broadcast %cst_36 : f32 to vector<8x16xf32>
    %103 = arith.cmpf ogt, %100, %102 : vector<8x16xf32>
    %cst_37 = arith.constant -1.000000e+30 : f32
    %104 = vector.shape_cast %101 : vector<1x16xf32> to vector<1x16xf32>
    %105 = vector.broadcast %104 : vector<1x16xf32> to vector<8x16xf32>
    %106 = vector.broadcast %cst_37 : f32 to vector<8x16xf32>
    %107 = arith.select %103, %105, %106 : vector<8x16xi1>, vector<8x16xf32>
    %cst_38 = arith.constant dense<0xFF800000> : vector<8xf32>
    %108 = vector.multi_reduction <maximumf>, %107, %cst_38 [1] : vector<8x16xf32> to vector<8xf32>
    %109 = vector.shape_cast %108 : vector<8xf32> to vector<8x1xf32>
    %110 = vector.broadcast %101 : vector<1x16xf32> to vector<8x16xf32>
    %111 = vector.broadcast %109 : vector<8x1xf32> to vector<8x16xf32>
    %112 = arith.subf %110, %111 : vector<8x16xf32>
    %cst_39 = arith.constant 0.000000e+00 : f32
    %113 = vector.broadcast %cst_39 : f32 to vector<8x16xf32>
    %114 = arith.minimumf %112, %113 : vector<8x16xf32>
    %115 = math.exp %114 : vector<8x16xf32>
    %cst_40 = arith.constant 0.000000e+00 : f32
    %116 = vector.broadcast %cst_40 : f32 to vector<8x16xf32>
    %117 = arith.select %103, %115, %116 : vector<8x16xi1>, vector<8x16xf32>
    %cst_41 = arith.constant dense<0.000000e+00> : vector<8xf32>
    %118 = vector.multi_reduction <add>, %117, %cst_41 [1] : vector<8x16xf32> to vector<8xf32>
    %119 = vector.shape_cast %118 : vector<8xf32> to vector<8x1xf32>
    %cst_42 = arith.constant 1.000000e-30 : f32
    %120 = vector.broadcast %cst_42 : f32 to vector<8x1xf32>
    %121 = arith.maximumf %119, %120 : vector<8x1xf32>
    %122 = tpu.reciprocal %121 {approx = true} : vector<8x1xf32> -> vector<8x1xf32>
    %123 = vector.broadcast %122 : vector<8x1xf32> to vector<8x16xf32>
    %124 = arith.mulf %117, %123 : vector<8x16xf32>
    %cst_43 = arith.constant dense<0.000000e+00> : vector<8x128xf32>
    %125 = tpu.matmul %124, %97, %cst_43 {dimension_numbers = #tpu.dot_dimension_numbers<[1], [0], [0], [1], [0, 0, 1, 1], [], []>} : vector<8x16xf32>, vector<16x128xf32>, vector<8x128xf32> -> vector<8x128xf32>
    %cst_44 = arith.constant dense<0.000000e+00> : vector<8x128xf32>
    %126 = tpu.matmul %125, %99, %cst_44 {dimension_numbers = #tpu.dot_dimension_numbers<[1], [0], [0], [1], [0, 0, 1, 1], [], []>} : vector<8x128xf32>, vector<128x128xf32>, vector<8x128xf32> -> vector<8x128xf32>
    %127 = tpu.iota {dimensions = array<i32: 1>} : vector<8x128xi32>
    %c5_i32 = arith.constant 5 : i32
    %128 = vector.broadcast %c5_i32 : i32 to vector<8x128xi32>
    %129 = arith.cmpi slt, %127, %128 : vector<8x128xi32>
    %cst_45 = arith.constant -3.000000e+38 : f32
    %130 = vector.broadcast %cst_45 : f32 to vector<8x128xf32>
    %131 = arith.select %129, %126, %130 : vector<8x128xi1>, vector<8x128xf32>
    %cst_46 = arith.constant dense<0xFF800000> : vector<8xf32>
    %132 = vector.multi_reduction <maximumf>, %131, %cst_46 [1] : vector<8x128xf32> to vector<8xf32>
    %133 = vector.shape_cast %132 : vector<8xf32> to vector<8x1xf32>
    %134 = vector.broadcast %133 : vector<8x1xf32> to vector<8x128xf32>
    %135 = arith.cmpf oeq, %131, %134 : vector<8x128xf32>
    %c128_i32 = arith.constant 128 : i32
    %136 = vector.broadcast %c128_i32 : i32 to vector<8x128xi32>
    %137 = arith.select %135, %127, %136 : vector<8x128xi1>, vector<8x128xi32>
    %cst_47 = arith.constant dense<2147483647> : vector<8xi32>
    %138 = vector.multi_reduction <minsi>, %137, %cst_47 [1] : vector<8x128xi32> to vector<8xi32>
    %139 = vector.shape_cast %138 : vector<8xi32> to vector<8x1xi32>
    %140 = vector.shape_cast %139 : vector<8x1xi32> to vector<8x1xi32>
    %141 = vector.broadcast %140 : vector<8x1xi32> to vector<8x128xi32>
    %c0_48 = arith.constant 0 : index
    %c0_49 = arith.constant 0 : index
    %142 = vector.load %arg2[%c0_48, %c0_49] : memref<8x128xi32, #tpu.memory_space<vmem>>, vector<8x128xi32>
    tpu.vector_store %arg2[%c0_48, %c0_49], %141 {strides = array<i32>} : memref<8x128xi32, #tpu.memory_space<vmem>>, vector<8x128xi32>,
    return
  }
  func.func @transform_0(%arg0: i32) -> (i32, i32) {
    %c0_i32 = arith.constant 0 : i32
    %c0_i32_0 = arith.constant 0 : i32
    %c0_i32_1 = arith.constant 0 : i32
    return %c0_i32, %c0_i32_0 : i32, i32
  }
  func.func @transform_1(%arg0: i32) -> (i32, i32) {
    %c0_i32 = arith.constant 0 : i32
    %c0_i32_0 = arith.constant 0 : i32
    %c0_i32_1 = arith.constant 0 : i32
    return %c0_i32, %c0_i32_0 : i32, i32
  }
}

</mosaic_0001>

<llo_original>
// kernel: _graph_cls_ggnn_impl.1
$region0: #{_graph_cls_ggnn_impl.1}
  #allocation0 [shape = 'u32[]', space=smem, size = 0x4, offset = 0x4, fixed_abs, tag = 'smem constant byte address 0x4 - core index']
  #allocation1 [shape = 'u32[144,128]{1,0:T(1,128)}', space=vmem, size = 0x12000, scoped, tag = 'internal scratch']
  #allocation2 [shape = 'f32[16,128]{1,0:T(8,128)}', space=vmem, size = 0x2000, scoped, tag = 'scratch operand']
  %s0 = inlined_call_operand.vmem [shape: f32[320,128], index: 0, kind: input, shape index: {}]
  %s1 = inlined_call_operand.vmem [shape: s32[8,128], index: 1, kind: output, shape index: {}]
  %s2 = sld [smem:[#allocation0]]
  $region14: #{_graph_cls_ggnn_impl.1} parent=0
    _
  %s4 = ssub.s32 1, %s2
  %s5 = scalar_select 0, %s4, %s2
  // Predicated region
  $region2: #{_graph_cls_ggnn_impl.1} parent=0 // pred_check
    _
  $region3: #{_graph_cls_ggnn_impl.1} parent=0 // pred_check_branch
    %7 = sbr.rel (0) target = $region5
  $region4: #{_graph_cls_ggnn_impl.1} parent=0 // pred_region
    _
  $region5: #{_graph_cls_ggnn_impl.1} parent=0 // pred_fallthru
    _
  %v8 = vld [vmem:[%s0 + $0x38] sm:$0xff]
  %v9 = vld [vmem:[%s0 + $0x40] sm:$0xff]
  %v10 = vld [vmem:[%s0 + $0x48] sm:$0xff]
  %v11 = vld [vmem:[%s0 + $0x50] sm:$0xff]
  %v12 = vld [vmem:[%s0 + $0x58] sm:$0xff]
  %v13 = vld [vmem:[%s0 + $0x60] sm:$0xff]
  %v14 = vld [vmem:[%s0 + $0x68] sm:$0xff]
  %v15 = vld [vmem:[%s0 + $0x70] sm:$0xff]
  %v16 = vld [vmem:[%s0 + $0x78] sm:$0xff]
  %v17 = vld [vmem:[%s0 + $0x80] sm:$0xff]
  %v18 = vld [vmem:[%s0 + $0x88] sm:$0xff]
  %v19 = vld [vmem:[%s0 + $0x90] sm:$0xff]
  %v20 = vld [vmem:[%s0 + $0x98] sm:$0xff]
  %v21 = vld [vmem:[%s0 + $0xa0] sm:$0xff]
  %v22 = vld [vmem:[%s0 + $0xa8] sm:$0xff]
  %v23 = vld [vmem:[%s0 + $0xb0] sm:$0xff]
  %v24 = vld [vmem:[%s0 + $0x10] sm:$0xff]
  %v25 = vld [vmem:[%s0 + $0x18] sm:$0xff]
  %v26 = vld [vmem:[%s0 + $0x20] sm:$0xff]
  %v27 = vld [vmem:[%s0 + $0x28] sm:$0xff]
  %v28 = vld [vmem:[%s0] sm:$0xff]
  %v29 = vld [vmem:[%s0 + $0x8] sm:$0xff]
  %30 = vst [vmem:[#allocation2] sm:$0xff] %v28
  %31 = vst [vmem:[#allocation2 + $0x8] sm:$0xff] %v29
  %v32 = vld [vmem:[#allocation2] sm:$0xff]
  %v33 = vld [vmem:[#allocation2 + $0x8] sm:$0xff]
  %vm34 = vcmask 130048
  %v36 = vsel %vm34, %v24, 0
  %v39 = vsel %vm34, %v25, 0
  %v42 = vsel %vm34, %v26, 0
  %v45 = vsel %vm34, %v27, 0
  %47 = vmatprep.subr.mxu0 0.0
  %48 = vmatpush1.msra.mxu0 %v32
  %49 = vmatprep.subr.mxu0 0.0
  %50 = vmatpush1.msra.mxu0 %v33
  %51 = vmatprep.subr.mxu0 0.0
  %52 = vmatpush1.msra.mxu0 0.0
  %53 = vmatprep.subr.mxu0 0.0
  %54 = vmatpush1.msra.mxu0 0.0
  %55 = vmatprep.subr.mxu0 0.0
  %56 = vmatpush1.msra.mxu0 0.0
  %57 = vmatprep.subr.mxu0 0.0
  %58 = vmatpush1.msra.mxu0 0.0
  %59 = vmatprep.subr.mxu0 0.0
  %60 = vmatpush1.msra.mxu0 0.0
  %61 = vmatprep.subr.mxu0 0.0
  %62 = vmatpush1.msra.mxu0 0.0
  %63 = vmatprep.subr.mxu0 0.0
  %64 = vmatpush1.msra.mxu0 0.0
  %65 = vmatprep.subr.mxu0 0.0
  %66 = vmatpush1.msra.mxu0 0.0
  %67 = vmatprep.subr.mxu0 0.0
  %68 = vmatpush1.msra.mxu0 0.0
  %69 = vmatprep.subr.mxu0 0.0
  %70 = vmatpush1.msra.mxu0 0.0
  %71 = vmatprep.subr.mxu0 0.0
  %72 = vmatpush1.msra.mxu0 0.0
  %73 = vmatprep.subr.mxu0 0.0
  %74 = vmatpush1.msra.mxu0 0.0
  %75 = vmatprep.subr.mxu0 0.0
  %76 = vmatpush1.msra.mxu0 0.0
  %77 = vmatprep.subr.mxu0 0.0
  %78 = vmatpush1.msra.mxu0 0.0
  %79 = vmatprep.subr.mxu0 0.0
  %80 = vmatpush1.msra.mxu0 0.0
  %81 = vmatprep.subr.mxu0 0.0
  %82 = vmatpush1.msra.mxu0 0.0
  %83 = vmatprep.subr.mxu0 0.0
  %84 = vmatpush1.msra.mxu0 0.0
  %85 = vmatprep.subr.mxu0 0.0
  %86 = vmatpush1.msra.mxu0 0.0
  %87 = vmatprep.subr.mxu0 0.0
  %88 = vmatpush1.msra.mxu0 0.0
  %89 = vmatprep.subr.mxu0 0.0
  %90 = vmatpush1.msra.mxu0 0.0
  %91 = vmatprep.subr.mxu0 0.0
  %92 = vmatpush1.msra.mxu0 0.0
  %93 = vmatprep.subr.mxu0 0.0
  %94 = vmatpush1.msra.mxu0 0.0
  %95 = vmatprep.subr.mxu0 0.0
  %96 = vmatpush1.msra.mxu0 0.0
  %97 = vmatprep.subr.mxu0 0.0
  %98 = vmatpush1.msra.mxu0 0.0
  %99 = vmatprep.subr.mxu0 0.0
  %100 = vmatpush1.msra.mxu0 0.0
  %101 = vmatprep.subr.mxu0 0.0
  %102 = vmatpush1.msra.mxu0 0.0
  %103 = vmatprep.subr.mxu0 0.0
  %104 = vmatpush1.msra.mxu0 0.0
  %105 = vmatprep.subr.mxu0 0.0
  %106 = vmatpush1.msra.mxu0 0.0
  %107 = vmatprep.subr.mxu0 0.0
  %108 = vmatpush1.msra.mxu0 0.0
  %109 = vmatprep.subr.mxu0 0.0
  %110 = vmatpush1.msra.mxu0 0.0
  %111 = vmatprep.mubr.f32.mxu0 0.0
  %112 = vmatmul.mubr.f32.gmra.mrb[0].mxu0 %v36
  %v113 = vpop.f32.mrb[0].mxu0
  %v114 = vadd.f32 0.0, %v113
  %v115 = vpop.f32.mrb[0].mxu0
  %116 = vmatprep.mubr.f32.mxu0 0.0
  %117 = vmatmul.mubr.f32.gmra.mrb[0].mxu0 %v39
  %v118 = vpop.f32.mrb[0].mxu0
  %v119 = vadd.f32 0.0, %v118
  %v120 = vpop.f32.mrb[0].mxu0
  %121 = vmatprep.mubr.f32.mxu0 0.0
  %122 = vmatmul.mubr.f32.gmra.mrb[0].mxu0 %v42
  %v123 = vpop.f32.mrb[0].mxu0
  %v124 = vadd.f32 0.0, %v123
  %v125 = vpop.f32.mrb[0].mxu0
  %126 = vmatprep.mubr.f32.mxu0 0.0
  %127 = vmatmul.mubr.f32.gmra.mrb[0].mxu0 %v45
  %v128 = vpop.f32.mrb[0].mxu0
  %v129 = vadd.f32 0.0, %v128
  %v130 = vpop.f32.mrb[0].mxu0
  %131 = vdwg.mxu0
  %vm132 = vcmask 261120
  %v134 = vsel %vm132, %v114, 0
  %v137 = vsel %vm132, %v119, 0
  %139 = vmatprep.subr.mxu0 0.0
  %140 = vmatpush1.msra.mxu0 %v8
  %141 = vmatprep.subr.mxu0 0.0
  %142 = vmatpush1.msra.mxu0 %v9
  %143 = vmatprep.subr.mxu0 0.0
  %144 = vmatpush1.msra.mxu0 %v10
  %145 = vmatprep.subr.mxu0 0.0
  %146 = vmatpush1.msra.mxu0 %v11
  %147 = vmatprep.subr.mxu0 0.0
  %148 = vmatpush1.msra.mxu0 0.0
  %149 = vmatprep.subr.mxu0 0.0
  %150 = vmatpush1.msra.mxu0 0.0
  %151 = vmatprep.subr.mxu0 0.0
  %152 = vmatpush1.msra.mxu0 0.0
  %153 = vmatprep.subr.mxu0 0.0
  %154 = vmatpush1.msra.mxu0 0.0
  %155 = vmatprep.subr.mxu0 0.0
  %156 = vmatpush1.msra.mxu0 0.0
  %157 = vmatprep.subr.mxu0 0.0
  %158 = vmatpush1.msra.mxu0 0.0
  %159 = vmatprep.subr.mxu0 0.0
  %160 = vmatpush1.msra.mxu0 0.0
  %161 = vmatprep.subr.mxu0 0.0
  %162 = vmatpush1.msra.mxu0 0.0
  %163 = vmatprep.subr.mxu0 0.0
  %164 = vmatpush1.msra.mxu0 0.0
  %165 = vmatprep.subr.mxu0 0.0
  %166 = vmatpush1.msra.mxu0 0.0
  %167 = vmatprep.subr.mxu0 0.0
  %168 = vmatpush1.msra.mxu0 0.0
  %169 = vmatprep.subr.mxu0 0.0
  %170 = vmatpush1.msra.mxu0 0.0
  %171 = vmatprep.subr.mxu0 0.0
  %172 = vmatpush1.msra.mxu0 0.0
  %173 = vmatprep.subr.mxu0 0.0
  %174 = vmatpush1.msra.mxu0 0.0
  %175 = vmatprep.subr.mxu0 0.0
  %176 = vmatpush1.msra.mxu0 0.0
  %177 = vmatprep.subr.mxu0 0.0
  %178 = vmatpush1.msra.mxu0 0.0
  %179 = vmatprep.subr.mxu0 0.0
  %180 = vmatpush1.msra.mxu0 0.0
  %181 = vmatprep.subr.mxu0 0.0
  %182 = vmatpush1.msra.mxu0 0.0
  %183 = vmatprep.subr.mxu0 0.0
  %184 = vmatpush1.msra.mxu0 0.0
  %185 = vmatprep.subr.mxu0 0.0
  %186 = vmatpush1.msra.mxu0 0.0
  %187 = vmatprep.subr.mxu0 0.0
  %188 = vmatpush1.msra.mxu0 0.0
  %189 = vmatprep.subr.mxu0 0.0
  %190 = vmatpush1.msra.mxu0 0.0
  %191 = vmatprep.subr.mxu0 0.0
  %192 = vmatpush1.msra.mxu0 0.0
  %193 = vmatprep.subr.mxu0 0.0
  %194 = vmatpush1.msra.mxu0 0.0
  %195 = vmatprep.subr.mxu0 0.0
  %196 = vmatpush1.msra.mxu0 0.0
  %197 = vmatprep.subr.mxu0 0.0
  %198 = vmatpush1.msra.mxu0 0.0
  %199 = vmatprep.subr.mxu0 0.0
  %200 = vmatpush1.msra.mxu0 0.0
  %201 = vmatprep.subr.mxu0 0.0
  %202 = vmatpush1.msra.mxu0 0.0
  %203 = vmatprep.mubr.f32.mxu0 0.0
  %204 = vmatmul.mubr.f32.gmra.mrb[0].mxu0 %v134
  %v205 = vpop.f32.mrb[0].mxu0
  %v206 = vadd.f32 0.0, %v205
  %v207 = vpop.f32.mrb[0].mxu0
  %208 = vmatprep.mubr.f32.mxu0 0.0
  %209 = vmatmul.mubr.f32.gmra.mrb[0].mxu0 %v137
  %v210 = vpop.f32.mrb[0].mxu0
  %v211 = vadd.f32 0.0, %v210
  %v212 = vpop.f32.mrb[0].mxu0
  %213 = vdwg.mxu0
  %v214 = vadd.f32 %v16, %v206
  %v215 = vadd.f32 %v17, %v211
  %v217 = vsel %vm132, %v124, 0
  %v220 = vsel %vm132, %v129, 0
  %222 = vmatprep.subr.mxu0 0.0
  %223 = vmatpush1.msra.mxu0 %v12
  %224 = vmatprep.subr.mxu0 0.0
  %225 = vmatpush1.msra.mxu0 %v13
  %226 = vmatprep.subr.mxu0 0.0
  %227 = vmatpush1.msra.mxu0 %v14
  %228 = vmatprep.subr.mxu0 0.0
  %229 = vmatpush1.msra.mxu0 %v15
  %230 = vmatprep.subr.mxu0 0.0
  %231 = vmatpush1.msra.mxu0 0.0
  %232 = vmatprep.subr.mxu0 0.0
  %233 = vmatpush1.msra.mxu0 0.0
  %234 = vmatprep.subr.mxu0 0.0
  %235 = vmatpush1.msra.mxu0 0.0
  %236 = vmatprep.subr.mxu0 0.0
  %237 = vmatpush1.msra.mxu0 0.0
  %238 = vmatprep.subr.mxu0 0.0
  %239 = vmatpush1.msra.mxu0 0.0
  %240 = vmatprep.subr.mxu0 0.0
  %241 = vmatpush1.msra.mxu0 0.0
  %242 = vmatprep.subr.mxu0 0.0
  %243 = vmatpush1.msra.mxu0 0.0
  %244 = vmatprep.subr.mxu0 0.0
  %245 = vmatpush1.msra.mxu0 0.0
  %246 = vmatprep.subr.mxu0 0.0
  %247 = vmatpush1.msra.mxu0 0.0
  %248 = vmatprep.subr.mxu0 0.0
  %249 = vmatpush1.msra.mxu0 0.0
  %250 = vmatprep.subr.mxu0 0.0
  %251 = vmatpush1.msra.mxu0 0.0
  %252 = vmatprep.subr.mxu0 0.0
  %253 = vmatpush1.msra.mxu0 0.0
  %254 = vmatprep.subr.mxu0 0.0
  %255 = vmatpush1.msra.mxu0 0.0
  %256 = vmatprep.subr.mxu0 0.0
  %257 = vmatpush1.msra.mxu0 0.0
  %258 = vmatprep.subr.mxu0 0.0
  %259 = vmatpush1.msra.mxu0 0.0
  %260 = vmatprep.subr.mxu0 0.0
  %261 = vmatpush1.msra.mxu0 0.0
  %262 = vmatprep.subr.mxu0 0.0
  %263 = vmatpush1.msra.mxu0 0.0
  %264 = vmatprep.subr.mxu0 0.0
  %265 = vmatpush1.msra.mxu0 0.0
  %266 = vmatprep.subr.mxu0 0.0
  %267 = vmatpush1.msra.mxu0 0.0
  %268 = vmatprep.subr.mxu0 0.0
  %269 = vmatpush1.msra.mxu0 0.0
  %270 = vmatprep.subr.mxu0 0.0
  %271 = vmatpush1.msra.mxu0 0.0
  %272 = vmatprep.subr.mxu0 0.0
  %273 = vmatpush1.msra.mxu0 0.0
  %274 = vmatprep.subr.mxu0 0.0
  %275 = vmatpush1.msra.mxu0 0.0
  %276 = vmatprep.subr.mxu0 0.0
  %277 = vmatpush1.msra.mxu0 0.0
  %278 = vmatprep.subr.mxu0 0.0
  %279 = vmatpush1.msra.mxu0 0.0
  %280 = vmatprep.subr.mxu0 0.0
  %281 = vmatpush1.msra.mxu0 0.0
  %282 = vmatprep.subr.mxu0 0.0
  %283 = vmatpush1.msra.mxu0 0.0
  %284 = vmatprep.subr.mxu0 0.0
  %285 = vmatpush1.msra.mxu0 0.0
  %286 = vmatprep.mubr.f32.mxu0 0.0
  %287 = vmatmul.mubr.f32.gmra.mrb[0].mxu0 %v217
  %v288 = vpop.f32.mrb[0].mxu0
  %v289 = vadd.f32 0.0, %v288
  %v290 = vpop.f32.mrb[0].mxu0
  %291 = vmatprep.mubr.f32.mxu0 0.0
  %292 = vmatmul.mubr.f32.gmra.mrb[0].mxu0 %v220
  %v293 = vpop.f32.mrb[0].mxu0
  %v294 = vadd.f32 0.0, %v293
  %v295 = vpop.f32.mrb[0].mxu0
  %296 = vdwg.mxu0
  %v297 = vadd.f32 %v214, %v289
  %v298 = vadd.f32 %v215, %v294
  %v300 = vsel %vm132, %v32, 0
  %v303 = vsel %vm132, %v33, 0
  %305 = vmatprep.subr.mxu0 0.0
  %306 = vmatpush1.msra.mxu0 %v18
  %307 = vmatprep.subr.mxu0 0.0
  %308 = vmatpush1.msra.mxu0 %v19
  %309 = vmatprep.subr.mxu0 0.0
  %310 = vmatpush1.msra.mxu0 %v20
  %311 = vmatprep.subr.mxu0 0.0
  %312 = vmatpush1.msra.mxu0 %v21
  %313 = vmatprep.subr.mxu0 0.0
  %314 = vmatpush1.msra.mxu0 0.0
  %315 = vmatprep.subr.mxu0 0.0
  %316 = vmatpush1.msra.mxu0 0.0
  %317 = vmatprep.subr.mxu0 0.0
  %318 = vmatpush1.msra.mxu0 0.0
  %319 = vmatprep.subr.mxu0 0.0
  %320 = vmatpush1.msra.mxu0 0.0
  %321 = vmatprep.subr.mxu0 0.0
  %322 = vmatpush1.msra.mxu0 0.0
  %323 = vmatprep.subr.mxu0 0.0
  %324 = vmatpush1.msra.mxu0 0.0
  %325 = vmatprep.subr.mxu0 0.0
  %326 = vmatpush1.msra.mxu0 0.0
  %327 = vmatprep.subr.mxu0 0.0
  %328 = vmatpush1.msra.mxu0 0.0
  %329 = vmatprep.subr.mxu0 0.0
  %330 = vmatpush1.msra.mxu0 0.0
  %331 = vmatprep.subr.mxu0 0.0
  %332 = vmatpush1.msra.mxu0 0.0
  %333 = vmatprep.subr.mxu0 0.0
  %334 = vmatpush1.msra.mxu0 0.0
  %335 = vmatprep.subr.mxu0 0.0
  %336 = vmatpush1.msra.mxu0 0.0
  %337 = vmatprep.subr.mxu0 0.0
  %338 = vmatpush1.msra.mxu0 0.0
  %339 = vmatprep.subr.mxu0 0.0
  %340 = vmatpush1.msra.mxu0 0.0
  %341 = vmatprep.subr.mxu0 0.0
  %342 = vmatpush1.msra.mxu0 0.0
  %343 = vmatprep.subr.mxu0 0.0
  %344 = vmatpush1.msra.mxu0 0.0
  %345 = vmatprep.subr.mxu0 0.0
  %346 = vmatpush1.msra.mxu0 0.0
  %347 = vmatprep.subr.mxu0 0.0
  %348 = vmatpush1.msra.mxu0 0.0
  %349 = vmatprep.subr.mxu0 0.0
  %350 = vmatpush1.msra.mxu0 0.0
  %351 = vmatprep.subr.mxu0 0.0
  %352 = vmatpush1.msra.mxu0 0.0
  %353 = vmatprep.subr.mxu0 0.0
  %354 = vmatpush1.msra.mxu0 0.0
  %355 = vmatprep.subr.mxu0 0.0
  %356 = vmatpush1.msra.mxu0 0.0
  %357 = vmatprep.subr.mxu0 0.0
  %358 = vmatpush1.msra.mxu0 0.0
  %359 = vmatprep.subr.mxu0 0.0
  %360 = vmatpush1.msra.mxu0 0.0
  %361 = vmatprep.subr.mxu0 0.0
  %362 = vmatpush1.msra.mxu0 0.0
  %363 = vmatprep.subr.mxu0 0.0
  %364 = vmatpush1.msra.mxu0 0.0
  %365 = vmatprep.subr.mxu0 0.0
  %366 = vmatpush1.msra.mxu0 0.0
  %367 = vmatprep.subr.mxu0 0.0
  %368 = vmatpush1.msra.mxu0 0.0
  %369 = vmatprep.mubr.f32.mxu0 0.0
  %370 = vmatmul.mubr.f32.gmra.mrb[0].mxu0 %v300
  %v371 = vpop.f32.mrb[0].mxu0
  %v372 = vadd.f32 %v22, %v371
  %v373 = vpop.f32.mrb[0].mxu0
  %374 = vmatprep.mubr.f32.mxu0 0.0
  %375 = vmatmul.mubr.f32.gmra.mrb[0].mxu0 %v303
  %v376 = vpop.f32.mrb[0].mxu0
  %v377 = vadd.f32 %v23, %v376
  %v378 = vpop.f32.mrb[0].mxu0
  %379 = vdwg.mxu0
  %v380 = vadd.f32 %v297, %v372
  %v381 = vadd.f32 %v298, %v377
  %v382 = vxor.u32 %v380, 2147483648
  %v383 = vxor.u32 %v381, 2147483648
  %v384 = vmul.f32 %v382, 1.442695
  %v385 = vpow.pop %v384
  %v386 = vmul.f32 %v383, 1.442695
  %v387 = vpow.pop %v386
  %v388 = vadd.f32 %v385, 1.0
  %v389 = vadd.f32 %v387, 1.0
  %v390 = vrcp.pop %v388
  %v391 = vmul.f32 1.0, %v390
  %v392 = vrcp.pop %v389
  %v393 = vmul.f32 1.0, %v392
  %396 = vrot.lane.b32.xlu0 %v372, 64
  %v397 = vpop.permute.xlu0 %396
  %398 = vrot.lane.b32.xlu0 %v377, 64
  %v399 = vpop.permute.xlu0 %398
  %v402 = vmul.f32 %v391, %v397
  %v403 = vmul.f32 %v393, %v399
  %406 = vrot.lane.b32.xlu0 %v402, 64
  %v407 = vpop.permute.xlu0 %406
  %408 = vrot.lane.b32.xlu0 %v403, 64
  %v409 = vpop.permute.xlu0 %408
  %v412 = vadd.f32 %v297, %v407
  %v413 = vadd.f32 %v298, %v409
  %v414 = vtanh.pop %v412
  %v415 = vtanh.pop %v413
  %v416 = vsub.f32 1.0, %v391
  %v417 = vsub.f32 1.0, %v393
  %420 = vrot.lane.b32.xlu0 %v414, 96
  %v421 = vpop.permute.xlu0 %420
  %422 = vrot.lane.b32.xlu0 %v415, 96
  %v423 = vpop.permute.xlu0 %422
  %v426 = vmul.f32 %v416, %v421
  %v427 = vmul.f32 %v417, %v423
  %428 = vrot.lane.b32.xlu0 %v32, 32
  %v429 = vpop.permute.xlu0 %428
  %430 = vrot.lane.b32.xlu0 %v33, 32
  %v431 = vpop.permute.xlu0 %430
  %v434 = vmul.f32 %v391, %v429
  %v435 = vmul.f32 %v393, %v431
  %v436 = vadd.f32 %v426, %v434
  %v437 = vadd.f32 %v427, %v435
  %440 = vrot.lane.b32.xlu0 %v436, 96
  %v441 = vpop.permute.xlu0 %440
  %442 = vrot.lane.b32.xlu0 %v437, 96
  %v443 = vpop.permute.xlu0 %442
  %446 = vmatprep.subr.mxu0 0.0
  %447 = vmatpush1.msra.mxu0 %v441
  %448 = vmatprep.subr.mxu0 0.0
  %449 = vmatpush1.msra.mxu0 %v443
  %450 = vmatprep.subr.mxu0 0.0
  %451 = vmatpush1.msra.mxu0 0.0
  %452 = vmatprep.subr.mxu0 0.0
  %453 = vmatpush1.msra.mxu0 0.0
  %454 = vmatprep.subr.mxu0 0.0
  %455 = vmatpush1.msra.mxu0 0.0
  %456 = vmatprep.subr.mxu0 0.0
  %457 = vmatpush1.msra.mxu0 0.0
  %458 = vmatprep.subr.mxu0 0.0
  %459 = vmatpush1.msra.mxu0 0.0
  %460 = vmatprep.subr.mxu0 0.0
  %461 = vmatpush1.msra.mxu0 0.0
  %462 = vmatprep.subr.mxu0 0.0
  %463 = vmatpush1.msra.mxu0 0.0
  %464 = vmatprep.subr.mxu0 0.0
  %465 = vmatpush1.msra.mxu0 0.0
  %466 = vmatprep.subr.mxu0 0.0
  %467 = vmatpush1.msra.mxu0 0.0
  %468 = vmatprep.subr.mxu0 0.0
  %469 = vmatpush1.msra.mxu0 0.0
  %470 = vmatprep.subr.mxu0 0.0
  %471 = vmatpush1.msra.mxu0 0.0
  %472 = vmatprep.subr.mxu0 0.0
  %473 = vmatpush1.msra.mxu0 0.0
  %474 = vmatprep.subr.mxu0 0.0
  %475 = vmatpush1.msra.mxu0 0.0
  %476 = vmatprep.subr.mxu0 0.0
  %477 = vmatpush1.msra.mxu0 0.0
  %478 = vmatprep.subr.mxu0 0.0
  %479 = vmatpush1.msra.mxu0 0.0
  %480 = vmatprep.subr.mxu0 0.0
  %481 = vmatpush1.msra.mxu0 0.0
  %482 = vmatprep.subr.mxu0 0.0
  %483 = vmatpush1.msra.mxu0 0.0
  %484 = vmatprep.subr.mxu0 0.0
  %485 = vmatpush1.msra.mxu0 0.0
  %486 = vmatprep.subr.mxu0 0.0
  %487 = vmatpush1.msra.mxu0 0.0
  %488 = vmatprep.subr.mxu0 0.0
  %489 = vmatpush1.msra.mxu0 0.0
  %490 = vmatprep.subr.mxu0 0.0
  %491 = vmatpush1.msra.mxu0 0.0
  %492 = vmatprep.subr.mxu0 0.0
  %493 = vmatpush1.msra.mxu0 0.0
  %494 = vmatprep.subr.mxu0 0.0
  %495 = vmatpush1.msra.mxu0 0.0
  %496 = vmatprep.subr.mxu0 0.0
  %497 = vmatpush1.msra.mxu0 0.0
  %498 = vmatprep.subr.mxu0 0.0
  %499 = vmatpush1.msra.mxu0 0.0
  %500 = vmatprep.subr.mxu0 0.0
  %501 = vmatpush1.msra.mxu0 0.0
  %502 = vmatprep.subr.mxu0 0.0
  %503 = vmatpush1.msra.mxu0 0.0
  %504 = vmatprep.subr.mxu0 0.0
  %505 = vmatpush1.msra.mxu0 0.0
  %506 = vmatprep.subr.mxu0 0.0
  %507 = vmatpush1.msra.mxu0 0.0
  %508 = vmatprep.subr.mxu0 0.0
  %509 = vmatpush1.msra.mxu0 0.0
  %510 = vmatprep.mubr.f32.mxu0 0.0
  %511 = vmatmul.mubr.f32.gmra.mrb[0].mxu0 %v36
  %v512 = vpop.f32.mrb[0].mxu0
  %v513 = vadd.f32 0.0, %v512
  %v514 = vpop.f32.mrb[0].mxu0
  %515 = vmatprep.mubr.f32.mxu0 0.0
  %516 = vmatmul.mubr.f32.gmra.mrb[0].mxu0 %v39
  %v517 = vpop.f32.mrb[0].mxu0
  %v518 = vadd.f32 0.0, %v517
  %v519 = vpop.f32.mrb[0].mxu0
  %520 = vmatprep.mubr.f32.mxu0 0.0
  %521 = vmatmul.mubr.f32.gmra.mrb[0].mxu0 %v42
  %v522 = vpop.f32.mrb[0].mxu0
  %v523 = vadd.f32 0.0, %v522
  %v524 = vpop.f32.mrb[0].mxu0
  %525 = vmatprep.mubr.f32.mxu0 0.0
  %526 = vmatmul.mubr.f32.gmra.mrb[0].mxu0 %v45
  %v527 = vpop.f32.mrb[0].mxu0
  %v528 = vadd.f32 0.0, %v527
  %v529 = vpop.f32.mrb[0].mxu0
  %530 = vdwg.mxu0
  %v532 = vsel %vm132, %v513, 0
  %v535 = vsel %vm132, %v518, 0
  %537 = vmatprep.subr.mxu0 0.0
  %538 = vmatpush1.msra.mxu0 %v8
  %539 = vmatprep.subr.mxu0 0.0
  %540 = vmatpush1.msra.mxu0 %v9
  %541 = vmatprep.subr.mxu0 0.0
  %542 = vmatpush1.msra.mxu0 %v10
  %543 = vmatprep.subr.mxu0 0.0
  %544 = vmatpush1.msra.mxu0 %v11
  %545 = vmatprep.subr.mxu0 0.0
  %546 = vmatpush1.msra.mxu0 0.0
  %547 = vmatprep.subr.mxu0 0.0
  %548 = vmatpush1.msra.mxu0 0.0
  %549 = vmatprep.subr.mxu0 0.0
  %550 = vmatpush1.msra.mxu0 0.0
  %551 = vmatprep.subr.mxu0 0.0
  %552 = vmatpush1.msra.mxu0 0.0
  %553 = vmatprep.subr.mxu0 0.0
  %554 = vmatpush1.msra.mxu0 0.0
  %555 = vmatprep.subr.mxu0 0.0
  %556 = vmatpush1.msra.mxu0 0.0
  %557 = vmatprep.subr.mxu0 0.0
  %558 = vmatpush1.msra.mxu0 0.0
  %559 = vmatprep.subr.mxu0 0.0
  %560 = vmatpush1.msra.mxu0 0.0
  %561 = vmatprep.subr.mxu0 0.0
  %562 = vmatpush1.msra.mxu0 0.0
  %563 = vmatprep.subr.mxu0 0.0
  %564 = vmatpush1.msra.mxu0 0.0
  %565 = vmatprep.subr.mxu0 0.0
  %566 = vmatpush1.msra.mxu0 0.0
  %567 = vmatprep.subr.mxu0 0.0
  %568 = vmatpush1.msra.mxu0 0.0
  %569 = vmatprep.subr.mxu0 0.0
  %570 = vmatpush1.msra.mxu0 0.0
  %571 = vmatprep.subr.mxu0 0.0
  %572 = vmatpush1.msra.mxu0 0.0
  %573 = vmatprep.subr.mxu0 0.0
  %574 = vmatpush1.msra.mxu0 0.0
  %575 = vmatprep.subr.mxu0 0.0
  %576 = vmatpush1.msra.mxu0 0.0
  %577 = vmatprep.subr.mxu0 0.0
  %578 = vmatpush1.msra.mxu0 0.0
  %579 = vmatprep.subr.mxu0 0.0
  %580 = vmatpush1.msra.mxu0 0.0
  %581 = vmatprep.subr.mxu0 0.0
  %582 = vmatpush1.msra.mxu0 0.0
  %583 = vmatprep.subr.mxu0 0.0
  %584 = vmatpush1.msra.mxu0 0.0
  %585 = vmatprep.subr.mxu0 0.0
  %586 = vmatpush1.msra.mxu0 0.0
  %587 = vmatprep.subr.mxu0 0.0
  %588 = vmatpush1.msra.mxu0 0.0
  %589 = vmatprep.subr.mxu0 0.0
  %590 = vmatpush1.msra.mxu0 0.0
  %591 = vmatprep.subr.mxu0 0.0
  %592 = vmatpush1.msra.mxu0 0.0
  %593 = vmatprep.subr.mxu0 0.0
  %594 = vmatpush1.msra.mxu0 0.0
  %595 = vmatprep.subr.mxu0 0.0
  %596 = vmatpush1.msra.mxu0 0.0
  %597 = vmatprep.subr.mxu0 0.0
  %598 = vmatpush1.msra.mxu0 0.0
  %599 = vmatprep.subr.mxu0 0.0
  %600 = vmatpush1.msra.mxu0 0.0
  %601 = vmatprep.mubr.f32.mxu0 0.0
  %602 = vmatmul.mubr.f32.gmra.mrb[0].mxu0 %v532
  %v603 = vpop.f32.mrb[0].mxu0
  %v604 = vadd.f32 0.0, %v603
  %v605 = vpop.f32.mrb[0].mxu0
  %606 = vmatprep.mubr.f32.mxu0 0.0
  %607 = vmatmul.mubr.f32.gmra.mrb[0].mxu0 %v535
  %v608 = vpop.f32.mrb[0].mxu0
  %v609 = vadd.f32 0.0, %v608
  %v610 = vpop.f32.mrb[0].mxu0
  %611 = vdwg.mxu0
  %v612 = vadd.f32 %v16, %v604
  %v613 = vadd.f32 %v17, %v609
  %v615 = vsel %vm132, %v523, 0
  %v618 = vsel %vm132, %v528, 0
  %620 = vmatprep.subr.mxu0 0.0
  %621 = vmatpush1.msra.mxu0 %v12
  %622 = vmatprep.subr.mxu0 0.0
  %623 = vmatpush1.msra.mxu0 %v13
  %624 = vmatprep.subr.mxu0 0.0
  %625 = vmatpush1.msra.mxu0 %v14
  %626 = vmatprep.subr.mxu0 0.0
  %627 = vmatpush1.msra.mxu0 %v15
  %628 = vmatprep.subr.mxu0 0.0
  %629 = vmatpush1.msra.mxu0 0.0
  %630 = vmatprep.subr.mxu0 0.0
  %631 = vmatpush1.msra.mxu0 0.0
  %632 = vmatprep.subr.mxu0 0.0
  %633 = vmatpush1.msra.mxu0 0.0
  %634 = vmatprep.subr.mxu0 0.0
  %635 = vmatpush1.msra.mxu0 0.0
  %636 = vmatprep.subr.mxu0 0.0
  %637 = vmatpush1.msra.mxu0 0.0
  %638 = vmatprep.subr.mxu0 0.0
  %639 = vmatpush1.msra.mxu0 0.0
  %640 = vmatprep.subr.mxu0 0.0
  %641 = vmatpush1.msra.mxu0 0.0
  %642 = vmatprep.subr.mxu0 0.0
  %643 = vmatpush1.msra.mxu0 0.0
  %644 = vmatprep.subr.mxu0 0.0
  %645 = vmatpush1.msra.mxu0 0.0
  %646 = vmatprep.subr.mxu0 0.0
  %647 = vmatpush1.msra.mxu0 0.0
  %648 = vmatprep.subr.mxu0 0.0
  %649 = vmatpush1.msra.mxu0 0.0
  %650 = vmatprep.subr.mxu0 0.0
  %651 = vmatpush1.msra.mxu0 0.0
  %652 = vmatprep.subr.mxu0 0.0
  %653 = vmatpush1.msra.mxu0 0.0
  %654 = vmatprep.subr.mxu0 0.0
  %655 = vmatpush1.msra.mxu0 0.0
  %656 = vmatprep.subr.mxu0 0.0
  %657 = vmatpush1.msra.mxu0 0.0
  %658 = vmatprep.subr.mxu0 0.0
  %659 = vmatpush1.msra.mxu0 0.0
  %660 = vmatprep.subr.mxu0 0.0
  %661 = vmatpush1.msra.mxu0 0.0
  %662 = vmatprep.subr.mxu0 0.0
  %663 = vmatpush1.msra.mxu0 0.0
  %664 = vmatprep.subr.mxu0 0.0
  %665 = vmatpush1.msra.mxu0 0.0
  %666 = vmatprep.subr.mxu0 0.0
  %667 = vmatpush1.msra.mxu0 0.0
  %668 = vmatprep.subr.mxu0 0.0
  %669 = vmatpush1.msra.mxu0 0.0
  %670 = vmatprep.subr.mxu0 0.0
  %671 = vmatpush1.msra.mxu0 0.0
  %672 = vmatprep.subr.mxu0 0.0
  %673 = vmatpush1.msra.mxu0 0.0
  %674 = vmatprep.subr.mxu0 0.0
  %675 = vmatpush1.msra.mxu0 0.0
  %676 = vmatprep.subr.mxu0 0.0
  %677 = vmatpush1.msra.mxu0 0.0
  %678 = vmatprep.subr.mxu0 0.0
  %679 = vmatpush1.msra.mxu0 0.0
  %680 = vmatprep.subr.mxu0 0.0
  %681 = vmatpush1.msra.mxu0 0.0
  %682 = vmatprep.subr.mxu0 0.0
  %683 = vmatpush1.msra.mxu0 0.0
  %684 = vmatprep.mubr.f32.mxu0 0.0
  %685 = vmatmul.mubr.f32.gmra.mrb[0].mxu0 %v615
  %v686 = vpop.f32.mrb[0].mxu0
  %v687 = vadd.f32 0.0, %v686
  %v688 = vpop.f32.mrb[0].mxu0
  %689 = vmatprep.mubr.f32.mxu0 0.0
  %690 = vmatmul.mubr.f32.gmra.mrb[0].mxu0 %v618
  %v691 = vpop.f32.mrb[0].mxu0
  %v692 = vadd.f32 0.0, %v691
  %v693 = vpop.f32.mrb[0].mxu0
  %694 = vdwg.mxu0
  %v695 = vadd.f32 %v612, %v687
  %v696 = vadd.f32 %v613, %v692
  %v697 = vsel %vm132, %v441, 0
  %v699 = vsel %vm132, %v443, 0
  %701 = vmatprep.subr.mxu0 0.0
  %702 = vmatpush1.msra.mxu0 %v18
  %703 = vmatprep.subr.mxu0 0.0
  %704 = vmatpush1.msra.mxu0 %v19
  %705 = vmatprep.subr.mxu0 0.0
  %706 = vmatpush1.msra.mxu0 %v20
  %707 = vmatprep.subr.mxu0 0.0
  %708 = vmatpush1.msra.mxu0 %v21
  %709 = vmatprep.subr.mxu0 0.0
  %710 = vmatpush1.msra.mxu0 0.0
  %711 = vmatprep.subr.mxu0 0.0
  %712 = vmatpush1.msra.mxu0 0.0
  %713 = vmatprep.subr.mxu0 0.0
  %714 = vmatpush1.msra.mxu0 0.0
  %715 = vmatprep.subr.mxu0 0.0
  %716 = vmatpush1.msra.mxu0 0.0
  %717 = vmatprep.subr.mxu0 0.0
  %718 = vmatpush1.msra.mxu0 0.0
  %719 = vmatprep.subr.mxu0 0.0
  %720 = vmatpush1.msra.mxu0 0.0
  %721 = vmatprep.subr.mxu0 0.0
  %722 = vmatpush1.msra.mxu0 0.0
  %723 = vmatprep.subr.mxu0 0.0
  %724 = vmatpush1.msra.mxu0 0.0
  %725 = vmatprep.subr.mxu0 0.0
  %726 = vmatpush1.msra.mxu0 0.0
  %727 = vmatprep.subr.mxu0 0.0
  %728 = vmatpush1.msra.mxu0 0.0
  %729 = vmatprep.subr.mxu0 0.0
  %730 = vmatpush1.msra.mxu0 0.0
  %731 = vmatprep.subr.mxu0 0.0
  %732 = vmatpush1.msra.mxu0 0.0
  %733 = vmatprep.subr.mxu0 0.0
  %734 = vmatpush1.msra.mxu0 0.0
  %735 = vmatprep.subr.mxu0 0.0
  %736 = vmatpush1.msra.mxu0 0.0
  %737 = vmatprep.subr.mxu0 0.0
  %738 = vmatpush1.msra.mxu0 0.0
  %739 = vmatprep.subr.mxu0 0.0
  %740 = vmatpush1.msra.mxu0 0.0
  %741 = vmatprep.subr.mxu0 0.0
  %742 = vmatpush1.msra.mxu0 0.0
  %743 = vmatprep.subr.mxu0 0.0
  %744 = vmatpush1.msra.mxu0 0.0
  %745 = vmatprep.subr.mxu0 0.0
  %746 = vmatpush1.msra.mxu0 0.0
  %747 = vmatprep.subr.mxu0 0.0
  %748 = vmatpush1.msra.mxu0 0.0
  %749 = vmatprep.subr.mxu0 0.0
  %750 = vmatpush1.msra.mxu0 0.0
  %751 = vmatprep.subr.mxu0 0.0
  %752 = vmatpush1.msra.mxu0 0.0
  %753 = vmatprep.subr.mxu0 0.0
  %754 = vmatpush1.msra.mxu0 0.0
  %755 = vmatprep.subr.mxu0 0.0
  %756 = vmatpush1.msra.mxu0 0.0
  %757 = vmatprep.subr.mxu0 0.0
  %758 = vmatpush1.msra.mxu0 0.0
  %759 = vmatprep.subr.mxu0 0.0
  %760 = vmatpush1.msra.mxu0 0.0
  %761 = vmatprep.subr.mxu0 0.0
  %762 = vmatpush1.msra.mxu0 0.0
  %763 = vmatprep.subr.mxu0 0.0
  %764 = vmatpush1.msra.mxu0 0.0
  %765 = vmatprep.mubr.f32.mxu0 0.0
  %766 = vmatmul.mubr.f32.gmra.mrb[0].mxu0 %v697
  %v767 = vpop.f32.mrb[0].mxu0
  %v768 = vadd.f32 %v22, %v767
  %v769 = vpop.f32.mrb[0].mxu0
  %770 = vmatprep.mubr.f32.mxu0 0.0
  %771 = vmatmul.mubr.f32.gmra.mrb[0].mxu0 %v699
  %v772 = vpop.f32.mrb[0].mxu0
  %v773 = vadd.f32 %v23, %v772
  %v774 = vpop.f32.mrb[0].mxu0
  %775 = vdwg.mxu0
  %v776 = vadd.f32 %v695, %v768
  %v777 = vadd.f32 %v696, %v773
  %v778 = vxor.u32 %v776, 2147483648
  %v779 = vxor.u32 %v777, 2147483648
  %v780 = vmul.f32 %v778, 1.442695
  %v781 = vpow.pop %v780
  %v782 = vmul.f32 %v779, 1.442695
  %v783 = vpow.pop %v782
  %v784 = vadd.f32 %v781, 1.0
  %v785 = vadd.f32 %v783, 1.0
  %v786 = vrcp.pop %v784
  %v787 = vmul.f32 1.0, %v786
  %v788 = vrcp.pop %v785
  %v789 = vmul.f32 1.0, %v788
  %792 = vrot.lane.b32.xlu0 %v768, 64
  %v793 = vpop.permute.xlu0 %792
  %794 = vrot.lane.b32.xlu0 %v773, 64
  %v795 = vpop.permute.xlu0 %794
  %v798 = vmul.f32 %v787, %v793
  %v799 = vmul.f32 %v789, %v795
  %802 = vrot.lane.b32.xlu0 %v798, 64
  %v803 = vpop.permute.xlu0 %802
  %804 = vrot.lane.b32.xlu0 %v799, 64
  %v805 = vpop.permute.xlu0 %804
  %v808 = vadd.f32 %v695, %v803
  %v809 = vadd.f32 %v696, %v805
  %v810 = vtanh.pop %v808
  %v811 = vtanh.pop %v809
  %v812 = vsub.f32 1.0, %v787
  %v813 = vsub.f32 1.0, %v789
  %816 = vrot.lane.b32.xlu0 %v810, 96
  %v817 = vpop.permute.xlu0 %816
  %818 = vrot.lane.b32.xlu0 %v811, 96
  %v819 = vpop.permute.xlu0 %818
  %v822 = vmul.f32 %v812, %v817
  %v823 = vmul.f32 %v813, %v819
  %v824 = vmul.f32 %v787, %v436
  %v825 = vmul.f32 %v789, %v437
  %v826 = vadd.f32 %v822, %v824
  %v827 = vadd.f32 %v823, %v825
  %830 = vrot.lane.b32.xlu0 %v826, 96
  %v831 = vpop.permute.xlu0 %830
  %832 = vrot.lane.b32.xlu0 %v827, 96
  %v833 = vpop.permute.xlu0 %832
  %836 = vmatprep.subr.mxu0 0.0
  %837 = vmatpush1.msra.mxu0 %v831
  %838 = vmatprep.subr.mxu0 0.0
  %839 = vmatpush1.msra.mxu0 %v833
  %840 = vmatprep.subr.mxu0 0.0
  %841 = vmatpush1.msra.mxu0 0.0
  %842 = vmatprep.subr.mxu0 0.0
  %843 = vmatpush1.msra.mxu0 0.0
  %844 = vmatprep.subr.mxu0 0.0
  %845 = vmatpush1.msra.mxu0 0.0
  %846 = vmatprep.subr.mxu0 0.0
  %847 = vmatpush1.msra.mxu0 0.0
  %848 = vmatprep.subr.mxu0 0.0
  %849 = vmatpush1.msra.mxu0 0.0
  %850 = vmatprep.subr.mxu0 0.0
  %851 = vmatpush1.msra.mxu0 0.0
  %852 = vmatprep.subr.mxu0 0.0
  %853 = vmatpush1.msra.mxu0 0.0
  %854 = vmatprep.subr.mxu0 0.0
  %855 = vmatpush1.msra.mxu0 0.0
  %856 = vmatprep.subr.mxu0 0.0
  %857 = vmatpush1.msra.mxu0 0.0
  %858 = vmatprep.subr.mxu0 0.0
  %859 = vmatpush1.msra.mxu0 0.0
  %860 = vmatprep.subr.mxu0 0.0
  %861 = vmatpush1.msra.mxu0 0.0
  %862 = vmatprep.subr.mxu0 0.0
  %863 = vmatpush1.msra.mxu0 0.0
  %864 = vmatprep.subr.mxu0 0.0
  %865 = vmatpush1.msra.mxu0 0.0
  %866 = vmatprep.subr.mxu0 0.0
  %867 = vmatpush1.msra.mxu0 0.0
  %868 = vmatprep.subr.mxu0 0.0
  %869 = vmatpush1.msra.mxu0 0.0
  %870 = vmatprep.subr.mxu0 0.0
  %871 = vmatpush1.msra.mxu0 0.0
  %872 = vmatprep.subr.mxu0 0.0
  %873 = vmatpush1.msra.mxu0 0.0
  %874 = vmatprep.subr.mxu0 0.0
  %875 = vmatpush1.msra.mxu0 0.0
  %876 = vmatprep.subr.mxu0 0.0
  %877 = vmatpush1.msra.mxu0 0.0
  %878 = vmatprep.subr.mxu0 0.0
  %879 = vmatpush1.msra.mxu0 0.0
  %880 = vmatprep.subr.mxu0 0.0
  %881 = vmatpush1.msra.mxu0 0.0
  %882 = vmatprep.subr.mxu0 0.0
  %883 = vmatpush1.msra.mxu0 0.0
  %884 = vmatprep.subr.mxu0 0.0
  %885 = vmatpush1.msra.mxu0 0.0
  %886 = vmatprep.subr.mxu0 0.0
  %887 = vmatpush1.msra.mxu0 0.0
  %888 = vmatprep.subr.mxu0 0.0
  %889 = vmatpush1.msra.mxu0 0.0
  %890 = vmatprep.subr.mxu0 0.0
  %891 = vmatpush1.msra.mxu0 0.0
  %892 = vmatprep.subr.mxu0 0.0
  %893 = vmatpush1.msra.mxu0 0.0
  %894 = vmatprep.subr.mxu0 0.0
  %895 = vmatpush1.msra.mxu0 0.0
  %896 = vmatprep.subr.mxu0 0.0
  %897 = vmatpush1.msra.mxu0 0.0
  %898 = vmatprep.subr.mxu0 0.0
  %899 = vmatpush1.msra.mxu0 0.0
  %900 = vmatprep.mubr.f32.mxu0 0.0
  %901 = vmatmul.mubr.f32.gmra.mrb[0].mxu0 %v36
  %v902 = vpop.f32.mrb[0].mxu0
  %v903 = vadd.f32 0.0, %v902
  %v904 = vpop.f32.mrb[0].mxu0
  %905 = vmatprep.mubr.f32.mxu0 0.0
  %906 = vmatmul.mubr.f32.gmra.mrb[0].mxu0 %v39
  %v907 = vpop.f32.mrb[0].mxu0
  %v908 = vadd.f32 0.0, %v907
  %v909 = vpop.f32.mrb[0].mxu0
  %910 = vmatprep.mubr.f32.mxu0 0.0
  %911 = vmatmul.mubr.f32.gmra.mrb[0].mxu0 %v42
  %v912 = vpop.f32.mrb[0].mxu0
  %v913 = vadd.f32 0.0, %v912
  %v914 = vpop.f32.mrb[0].mxu0
  %915 = vmatprep.mubr.f32.mxu0 0.0
  %916 = vmatmul.mubr.f32.gmra.mrb[0].mxu0 %v45
  %v917 = vpop.f32.mrb[0].mxu0
  %v918 = vadd.f32 0.0, %v917
  %v919 = vpop.f32.mrb[0].mxu0
  %920 = vdwg.mxu0
  %v922 = vsel %vm132, %v903, 0
  %v925 = vsel %vm132, %v908, 0
  %927 = vmatprep.subr.mxu0 0.0
  %928 = vmatpush1.msra.mxu0 %v8
  %929 = vmatprep.subr.mxu0 0.0
  %930 = vmatpush1.msra.mxu0 %v9
  %931 = vmatprep.subr.mxu0 0.0
  %932 = vmatpush1.msra.mxu0 %v10
  %933 = vmatprep.subr.mxu0 0.0
  %934 = vmatpush1.msra.mxu0 %v11
  %935 = vmatprep.subr.mxu0 0.0
  %936 = vmatpush1.msra.mxu0 0.0
  %937 = vmatprep.subr.mxu0 0.0
  %938 = vmatpush1.msra.mxu0 0.0
  %939 = vmatprep.subr.mxu0 0.0
  %940 = vmatpush1.msra.mxu0 0.0
  %941 = vmatprep.subr.mxu0 0.0
  %942 = vmatpush1.msra.mxu0 0.0
  %943 = vmatprep.subr.mxu0 0.0
  %944 = vmatpush1.msra.mxu0 0.0
  %945 = vmatprep.subr.mxu0 0.0
  %946 = vmatpush1.msra.mxu0 0.0
  %947 = vmatprep.subr.mxu0 0.0
  %948 = vmatpush1.msra.mxu0 0.0
  %949 = vmatprep.subr.mxu0 0.0
  %950 = vmatpush1.msra.mxu0 0.0
  %951 = vmatprep.subr.mxu0 0.0
  %952 = vmatpush1.msra.mxu0 0.0
  %953 = vmatprep.subr.mxu0 0.0
  %954 = vmatpush1.msra.mxu0 0.0
  %955 = vmatprep.subr.mxu0 0.0
  %956 = vmatpush1.msra.mxu0 0.0
  %957 = vmatprep.subr.mxu0 0.0
  %958 = vmatpush1.msra.mxu0 0.0
  %959 = vmatprep.subr.mxu0 0.0
  %960 = vmatpush1.msra.mxu0 0.0
  %961 = vmatprep.subr.mxu0 0.0
  %962 = vmatpush1.msra.mxu0 0.0
  %963 = vmatprep.subr.mxu0 0.0
  %964 = vmatpush1.msra.mxu0 0.0
  %965 = vmatprep.subr.mxu0 0.0
  %966 = vmatpush1.msra.mxu0 0.0
  %967 = vmatprep.subr.mxu0 0.0
  %968 = vmatpush1.msra.mxu0 0.0
  %969 = vmatprep.subr.mxu0 0.0
  %970 = vmatpush1.msra.mxu0 0.0
  %971 = vmatprep.subr.mxu0 0.0
  %972 = vmatpush1.msra.mxu0 0.0
  %973 = vmatprep.subr.mxu0 0.0
  %974 = vmatpush1.msra.mxu0 0.0
  %975 = vmatprep.subr.mxu0 0.0
  %976 = vmatpush1.msra.mxu0 0.0
  %977 = vmatprep.subr.mxu0 0.0
  %978 = vmatpush1.msra.mxu0 0.0
  %979 = vmatprep.subr.mxu0 0.0
  %980 = vmatpush1.msra.mxu0 0.0
  %981 = vmatprep.subr.mxu0 0.0
  %982 = vmatpush1.msra.mxu0 0.0
  %983 = vmatprep.subr.mxu0 0.0
  %984 = vmatpush1.msra.mxu0 0.0
  %985 = vmatprep.subr.mxu0 0.0
  %986 = vmatpush1.msra.mxu0 0.0
  %987 = vmatprep.subr.mxu0 0.0
  %988 = vmatpush1.msra.mxu0 0.0
  %989 = vmatprep.subr.mxu0 0.0
  %990 = vmatpush1.msra.mxu0 0.0
  %991 = vmatprep.mubr.f32.mxu0 0.0
  %992 = vmatmul.mubr.f32.gmra.mrb[0].mxu0 %v922
  %v993 = vpop.f32.mrb[0].mxu0
  %v994 = vadd.f32 0.0, %v993
  %v995 = vpop.f32.mrb[0].mxu0
  %996 = vmatprep.mubr.f32.mxu0 0.0
  %997 = vmatmul.mubr.f32.gmra.mrb[0].mxu0 %v925
  %v998 = vpop.f32.mrb[0].mxu0
  %v999 = vadd.f32 0.0, %v998
  %v1000 = vpop.f32.mrb[0].mxu0
  %1001 = vdwg.mxu0
  %v1002 = vadd.f32 %v16, %v994
  %v1003 = vadd.f32 %v17, %v999
  %v1005 = vsel %vm132, %v913, 0
  %v1008 = vsel %vm132, %v918, 0
  %1010 = vmatprep.subr.mxu0 0.0
  %1011 = vmatpush1.msra.mxu0 %v12
  %1012 = vmatprep.subr.mxu0 0.0
  %1013 = vmatpush1.msra.mxu0 %v13
  %1014 = vmatprep.subr.mxu0 0.0
  %1015 = vmatpush1.msra.mxu0 %v14
  %1016 = vmatprep.subr.mxu0 0.0
  %1017 = vmatpush1.msra.mxu0 %v15
  %1018 = vmatprep.subr.mxu0 0.0
  %1019 = vmatpush1.msra.mxu0 0.0
  %1020 = vmatprep.subr.mxu0 0.0
  %1021 = vmatpush1.msra.mxu0 0.0
  %1022 = vmatprep.subr.mxu0 0.0
  %1023 = vmatpush1.msra.mxu0 0.0
  %1024 = vmatprep.subr.mxu0 0.0
  %1025 = vmatpush1.msra.mxu0 0.0
  %1026 = vmatprep.subr.mxu0 0.0
  %1027 = vmatpush1.msra.mxu0 0.0
  %1028 = vmatprep.subr.mxu0 0.0
  %1029 = vmatpush1.msra.mxu0 0.0
  %1030 = vmatprep.subr.mxu0 0.0
  %1031 = vmatpush1.msra.mxu0 0.0
  %1032 = vmatprep.subr.mxu0 0.0
  %1033 = vmatpush1.msra.mxu0 0.0
  %1034 = vmatprep.subr.mxu0 0.0
  %1035 = vmatpush1.msra.mxu0 0.0
  %1036 = vmatprep.subr.mxu0 0.0
  %1037 = vmatpush1.msra.mxu0 0.0
  %1038 = vmatprep.subr.mxu0 0.0
  %1039 = vmatpush1.msra.mxu0 0.0
  %1040 = vmatprep.subr.mxu0 0.0
  %1041 = vmatpush1.msra.mxu0 0.0
  %1042 = vmatprep.subr.mxu0 0.0
  %1043 = vmatpush1.msra.mxu0 0.0
  %1044 = vmatprep.subr.mxu0 0.0
  %1045 = vmatpush1.msra.mxu0 0.0
  %1046 = vmatprep.subr.mxu0 0.0
  %1047 = vmatpush1.msra.mxu0 0.0
  %1048 = vmatprep.subr.mxu0 0.0
  %1049 = vmatpush1.msra.mxu0 0.0
  %1050 = vmatprep.subr.mxu0 0.0
  %1051 = vmatpush1.msra.mxu0 0.0
  %1052 = vmatprep.subr.mxu0 0.0
  %1053 = vmatpush1.msra.mxu0 0.0
  %1054 = vmatprep.subr.mxu0 0.0
  %1055 = vmatpush1.msra.mxu0 0.0
  %1056 = vmatprep.subr.mxu0 0.0
  %1057 = vmatpush1.msra.mxu0 0.0
  %1058 = vmatprep.subr.mxu0 0.0
  %1059 = vmatpush1.msra.mxu0 0.0
  %1060 = vmatprep.subr.mxu0 0.0
  %1061 = vmatpush1.msra.mxu0 0.0
  %1062 = vmatprep.subr.mxu0 0.0
  %1063 = vmatpush1.msra.mxu0 0.0
  %1064 = vmatprep.subr.mxu0 0.0
  %1065 = vmatpush1.msra.mxu0 0.0
  %1066 = vmatprep.subr.mxu0 0.0
  %1067 = vmatpush1.msra.mxu0 0.0
  %1068 = vmatprep.subr.mxu0 0.0
  %1069 = vmatpush1.msra.mxu0 0.0
  %1070 = vmatprep.subr.mxu0 0.0
  %1071 = vmatpush1.msra.mxu0 0.0
  %1072 = vmatprep.subr.mxu0 0.0
  %1073 = vmatpush1.msra.mxu0 0.0
  %1074 = vmatprep.mubr.f32.mxu0 0.0
  %1075 = vmatmul.mubr.f32.gmra.mrb[0].mxu0 %v1005
  %v1076 = vpop.f32.mrb[0].mxu0
  %v1077 = vadd.f32 0.0, %v1076
  %v1078 = vpop.f32.mrb[0].mxu0
  %1079 = vmatprep.mubr.f32.mxu0 0.0
  %1080 = vmatmul.mubr.f32.gmra.mrb[0].mxu0 %v1008
  %v1081 = vpop.f32.mrb[0].mxu0
  %v1082 = vadd.f32 0.0, %v1081
  %v1083 = vpop.f32.mrb[0].mxu0
  %1084 = vdwg.mxu0
  %v1085 = vadd.f32 %v1002, %v1077
  %v1086 = vadd.f32 %v1003, %v1082
  %v1087 = vsel %vm132, %v831, 0
  %v1089 = vsel %vm132, %v833, 0
  %1091 = vmatprep.subr.mxu0 0.0
  %1092 = vmatpush1.msra.mxu0 %v18
  %1093 = vmatprep.subr.mxu0 0.0
  %1094 = vmatpush1.msra.mxu0 %v19
  %1095 = vmatprep.subr.mxu0 0.0
  %1096 = vmatpush1.msra.mxu0 %v20
  %1097 = vmatprep.subr.mxu0 0.0
  %1098 = vmatpush1.msra.mxu0 %v21
  %1099 = vmatprep.subr.mxu0 0.0
  %1100 = vmatpush1.msra.mxu0 0.0
  %1101 = vmatprep.subr.mxu0 0.0
  %1102 = vmatpush1.msra.mxu0 0.0
  %1103 = vmatprep.subr.mxu0 0.0
  %1104 = vmatpush1.msra.mxu0 0.0
  %1105 = vmatprep.subr.mxu0 0.0
  %1106 = vmatpush1.msra.mxu0 0.0
  %1107 = vmatprep.subr.mxu0 0.0
  %1108 = vmatpush1.msra.mxu0 0.0
  %1109 = vmatprep.subr.mxu0 0.0
  %1110 = vmatpush1.msra.mxu0 0.0
  %1111 = vmatprep.subr.mxu0 0.0
  %1112 = vmatpush1.msra.mxu0 0.0
  %1113 = vmatprep.subr.mxu0 0.0
  %1114 = vmatpush1.msra.mxu0 0.0
  %1115 = vmatprep.subr.mxu0 0.0
  %1116 = vmatpush1.msra.mxu0 0.0
  %1117 = vmatprep.subr.mxu0 0.0
  %1118 = vmatpush1.msra.mxu0 0.0
  %1119 = vmatprep.subr.mxu0 0.0
  %1120 = vmatpush1.msra.mxu0 0.0
  %1121 = vmatprep.subr.mxu0 0.0
  %1122 = vmatpush1.msra.mxu0 0.0
  %1123 = vmatprep.subr.mxu0 0.0
  %1124 = vmatpush1.msra.mxu0 0.0
  %1125 = vmatprep.subr.mxu0 0.0
  %1126 = vmatpush1.msra.mxu0 0.0
  %1127 = vmatprep.subr.mxu0 0.0
  %1128 = vmatpush1.msra.mxu0 0.0
  %1129 = vmatprep.subr.mxu0 0.0
  %1130 = vmatpush1.msra.mxu0 0.0
  %1131 = vmatprep.subr.mxu0 0.0
  %1132 = vmatpush1.msra.mxu0 0.0
  %1133 = vmatprep.subr.mxu0 0.0
  %1134 = vmatpush1.msra.mxu0 0.0
  %1135 = vmatprep.subr.mxu0 0.0
  %1136 = vmatpush1.msra.mxu0 0.0
  %1137 = vmatprep.subr.mxu0 0.0
  %1138 = vmatpush1.msra.mxu0 0.0
  %1139 = vmatprep.subr.mxu0 0.0
  %1140 = vmatpush1.msra.mxu0 0.0
  %1141 = vmatprep.subr.mxu0 0.0
  %1142 = vmatpush1.msra.mxu0 0.0
  %1143 = vmatprep.subr.mxu0 0.0
  %1144 = vmatpush1.msra.mxu0 0.0
  %1145 = vmatprep.subr.mxu0 0.0
  %1146 = vmatpush1.msra.mxu0 0.0
  %1147 = vmatprep.subr.mxu0 0.0
  %1148 = vmatpush1.msra.mxu0 0.0
  %1149 = vmatprep.subr.mxu0 0.0
  %1150 = vmatpush1.msra.mxu0 0.0
  %1151 = vmatprep.subr.mxu0 0.0
  %1152 = vmatpush1.msra.mxu0 0.0
  %1153 = vmatprep.subr.mxu0 0.0
  %1154 = vmatpush1.msra.mxu0 0.0
  %1155 = vmatprep.mubr.f32.mxu0 0.0
  %1156 = vmatmul.mubr.f32.gmra.mrb[0].mxu0 %v1087
  %v1157 = vpop.f32.mrb[0].mxu0
  %v1158 = vadd.f32 %v22, %v1157
  %v1159 = vpop.f32.mrb[0].mxu0
  %1160 = vmatprep.mubr.f32.mxu0 0.0
  %1161 = vmatmul.mubr.f32.gmra.mrb[0].mxu0 %v1089
  %v1162 = vpop.f32.mrb[0].mxu0
  %v1163 = vadd.f32 %v23, %v1162
  %v1164 = vpop.f32.mrb[0].mxu0
  %1165 = vdwg.mxu0
  %v1166 = vadd.f32 %v1085, %v1158
  %v1167 = vadd.f32 %v1086, %v1163
  %v1168 = vxor.u32 %v1166, 2147483648
  %v1169 = vxor.u32 %v1167, 2147483648
  %v1170 = vmul.f32 %v1168, 1.442695
  %v1171 = vpow.pop %v1170
  %v1172 = vmul.f32 %v1169, 1.442695
  %v1173 = vpow.pop %v1172
  %v1174 = vadd.f32 %v1171, 1.0
  %v1175 = vadd.f32 %v1173, 1.0
  %v1176 = vrcp.pop %v1174
  %v1177 = vmul.f32 1.0, %v1176
  %v1178 = vrcp.pop %v1175
  %v1179 = vmul.f32 1.0, %v1178
  %1182 = vrot.lane.b32.xlu0 %v1158, 64
  %v1183 = vpop.permute.xlu0 %1182
  %1184 = vrot.lane.b32.xlu0 %v1163, 64
  %v1185 = vpop.permute.xlu0 %1184
  %v1188 = vmul.f32 %v1177, %v1183
  %v1189 = vmul.f32 %v1179, %v1185
  %1192 = vrot.lane.b32.xlu0 %v1188, 64
  %v1193 = vpop.permute.xlu0 %1192
  %1194 = vrot.lane.b32.xlu0 %v1189, 64
  %v1195 = vpop.permute.xlu0 %1194
  %v1198 = vadd.f32 %v1085, %v1193
  %v1199 = vadd.f32 %v1086, %v1195
  %v1200 = vtanh.pop %v1198
  %v1201 = vtanh.pop %v1199
  %v1202 = vsub.f32 1.0, %v1177
  %v1203 = vsub.f32 1.0, %v1179
  %1206 = vrot.lane.b32.xlu0 %v1200, 96
  %v1207 = vpop.permute.xlu0 %1206
  %1208 = vrot.lane.b32.xlu0 %v1201, 96
  %v1209 = vpop.permute.xlu0 %1208
  %v1212 = vmul.f32 %v1202, %v1207
  %v1213 = vmul.f32 %v1203, %v1209
  %v1214 = vmul.f32 %v1177, %v826
  %v1215 = vmul.f32 %v1179, %v827
  %v1216 = vadd.f32 %v1212, %v1214
  %v1217 = vadd.f32 %v1213, %v1215
  %1220 = vrot.lane.b32.xlu0 %v1216, 96
  %v1221 = vpop.permute.xlu0 %1220
  %1222 = vrot.lane.b32.xlu0 %v1217, 96
  %v1223 = vpop.permute.xlu0 %1222
  %1226 = vst.msk [vmem:[#allocation2] sm:$0xff] %vm132, %v1221
  %1227 = vst.msk [vmem:[#allocation2 + $0x8] sm:$0xff] %vm132, %v1223
  %v1228 = vld [vmem:[#allocation2] sm:$0xff]
  %v1229 = vld [vmem:[#allocation2 + $0x8] sm:$0xff]
  %v1230 = vld [vmem:[%s0 + $0xb8] sm:$0x1]
  %v1231 = vld [vmem:[%s0 + $0xc0] sm:$0xff]
  %v1232 = vld [vmem:[%s0 + $0xc8] sm:$0xff]
  %v1233 = vld [vmem:[%s0 + $0xd0] sm:$0xff]
  %v1234 = vld [vmem:[%s0 + $0xd8] sm:$0xff]
  %v1235 = vld [vmem:[%s0 + $0xe0] sm:$0xff]
  %v1236 = vld [vmem:[%s0 + $0xe8] sm:$0xff]
  %v1237 = vld [vmem:[%s0 + $0xf0] sm:$0xff]
  %v1238 = vld [vmem:[%s0 + $0xf8] sm:$0xff]
  %v1239 = vld [vmem:[%s0 + $0x100] sm:$0xff]
  %v1240 = vld [vmem:[%s0 + $0x108] sm:$0xff]
  %v1241 = vld [vmem:[%s0 + $0x110] sm:$0xff]
  %v1242 = vld [vmem:[%s0 + $0x118] sm:$0xff]
  %v1243 = vld [vmem:[%s0 + $0x120] sm:$0xff]
  %v1244 = vld [vmem:[%s0 + $0x128] sm:$0xff]
  %v1245 = vld [vmem:[%s0 + $0x130] sm:$0xff]
  %v1246 = vld [vmem:[%s0 + $0x138] sm:$0xff]
  %v1247 = vld [vmem:[%s0 + $0x30] sm:$0xff]
  %1248 = vmatprep.subr.mxu0 0.0
  %1249 = vmatpush1.xpose.msra.mxu0 %v1228
  %1250 = vmatprep.subr.mxu0 0.0
  %1251 = vmatpush1.xpose.msra.mxu0 %v1229
  %1252 = vmatprep.subr.mxu0 0.0
  %1253 = vmatpush1.xpose.msra.mxu0 0.0
  %1254 = vmatprep.subr.mxu0 0.0
  %1255 = vmatpush1.xpose.msra.mxu0 0.0
  %1256 = vmatprep.subr.mxu0 0.0
  %1257 = vmatpush1.xpose.msra.mxu0 0.0
  %1258 = vmatprep.subr.mxu0 0.0
  %1259 = vmatpush1.xpose.msra.mxu0 0.0
  %1260 = vmatprep.subr.mxu0 0.0
  %1261 = vmatpush1.xpose.msra.mxu0 0.0
  %1262 = vmatprep.subr.mxu0 0.0
  %1263 = vmatpush1.xpose.msra.mxu0 0.0
  %1264 = vmatprep.subr.mxu0 0.0
  %1265 = vmatpush1.xpose.msra.mxu0 0.0
  %1266 = vmatprep.subr.mxu0 0.0
  %1267 = vmatpush1.xpose.msra.mxu0 0.0
  %1268 = vmatprep.subr.mxu0 0.0
  %1269 = vmatpush1.xpose.msra.mxu0 0.0
  %1270 = vmatprep.subr.mxu0 0.0
  %1271 = vmatpush1.xpose.msra.mxu0 0.0
  %1272 = vmatprep.subr.mxu0 0.0
  %1273 = vmatpush1.xpose.msra.mxu0 0.0
  %1274 = vmatprep.subr.mxu0 0.0
  %1275 = vmatpush1.xpose.msra.mxu0 0.0
  %1276 = vmatprep.subr.mxu0 0.0
  %1277 = vmatpush1.xpose.msra.mxu0 0.0
  %1278 = vmatprep.subr.mxu0 0.0
  %1279 = vmatpush1.xpose.msra.mxu0 0.0
  %1280 = vmatprep.subr.mxu0 0.0
  %1281 = vmatpush1.xpose.msra.mxu0 0.0
  %1282 = vmatprep.subr.mxu0 0.0
  %1283 = vmatpush1.xpose.msra.mxu0 0.0
  %1284 = vmatprep.subr.mxu0 0.0
  %1285 = vmatpush1.xpose.msra.mxu0 0.0
  %1286 = vmatprep.subr.mxu0 0.0
  %1287 = vmatpush1.xpose.msra.mxu0 0.0
  %1288 = vmatprep.subr.mxu0 0.0
  %1289 = vmatpush1.xpose.msra.mxu0 0.0
  %1290 = vmatprep.subr.mxu0 0.0
  %1291 = vmatpush1.xpose.msra.mxu0 0.0
  %1292 = vmatprep.subr.mxu0 0.0
  %1293 = vmatpush1.xpose.msra.mxu0 0.0
  %1294 = vmatprep.subr.mxu0 0.0
  %1295 = vmatpush1.xpose.msra.mxu0 0.0
  %1296 = vmatprep.subr.mxu0 0.0
  %1297 = vmatpush1.xpose.msra.mxu0 0.0
  %1298 = vmatprep.subr.mxu0 0.0
  %1299 = vmatpush1.xpose.msra.mxu0 0.0
  %1300 = vmatprep.subr.mxu0 0.0
  %1301 = vmatpush1.xpose.msra.mxu0 0.0
  %1302 = vmatprep.subr.mxu0 0.0
  %1303 = vmatpush1.xpose.msra.mxu0 0.0
  %1304 = vmatprep.subr.mxu0 0.0
  %1305 = vmatpush1.xpose.msra.mxu0 0.0
  %1306 = vmatprep.subr.mxu0 0.0
  %1307 = vmatpush1.xpose.msra.mxu0 0.0
  %1308 = vmatprep.subr.mxu0 0.0
  %1309 = vmatpush1.xpose.msra.mxu0 0.0
  %1310 = vmatprep.subr.mxu0 0.0
  %1311 = vmatpush1.xpose.msra.mxu0 0.0
  %1312 = vmatprep.mubr.f32.mxu0 0.0
  %1313 = vmatmul.mubr.f32.gmra.mrb[0].mxu0 %v1230
  %v1314 = vpop.f32.mrb[0].mxu0
  %v1315 = vadd.f32 0.0, %v1314
  %v1316 = vpop.f32.mrb[0].mxu0
  %1317 = vdwg.mxu0
  %vm1318 = vcmp.gt.f32.partialorder %v1247, 0.5
  %v1319 = vlaneseq
  %v1320 = vshrl.u32 %v1319, 7
  %v1321 = vsub.s32 0, %v1320
  %v1322 = vrot.slane %v1315, %v1321
  %v1323 = vsel %vm1318, %v1322, -1e+30
  %v1324 = vsel %vm34, %v1323, -inf
  %1325 = vmax.xlane.f32.xlu0 %v1324
  %v1326 = vpop.xlane.xlu0 %1325
  %v1327 = vsub.f32 %v1322, %v1326
  %v1328 = vmin.f32 %v1327, 0.0
  %v1329 = vmul.f32 %v1328, 1.442695
  %v1330 = vpow.pop %v1329
  %v1331 = vsel %vm1318, %v1330, 0.0
  %v1332 = vsel %vm34, %v1331, 0.0
  %1333 = vadd.xlane.f32.xlu0 %v1332
  %v1334 = vpop.xlane.xlu0 %1333
  %v1335 = vmax.f32 %v1334, 1e-30
  %v1336 = vrcp.pop %v1335
  %v1337 = vmul.f32 %v1331, %v1336
  %v1339 = vsel %vm34, %v1337, 0
  %1341 = vmatprep.subr.mxu0 0.0
  %1342 = vmatpush1.msra.mxu0 %v1228
  %1343 = vmatprep.subr.mxu0 0.0
  %1344 = vmatpush1.msra.mxu0 %v1229
  %1345 = vmatprep.subr.mxu0 0.0
  %1346 = vmatpush1.msra.mxu0 0.0
  %1347 = vmatprep.subr.mxu0 0.0
  %1348 = vmatpush1.msra.mxu0 0.0
  %1349 = vmatprep.subr.mxu0 0.0
  %1350 = vmatpush1.msra.mxu0 0.0
  %1351 = vmatprep.subr.mxu0 0.0
  %1352 = vmatpush1.msra.mxu0 0.0
  %1353 = vmatprep.subr.mxu0 0.0
  %1354 = vmatpush1.msra.mxu0 0.0
  %1355 = vmatprep.subr.mxu0 0.0
  %1356 = vmatpush1.msra.mxu0 0.0
  %1357 = vmatprep.subr.mxu0 0.0
  %1358 = vmatpush1.msra.mxu0 0.0
  %1359 = vmatprep.subr.mxu0 0.0
  %1360 = vmatpush1.msra.mxu0 0.0
  %1361 = vmatprep.subr.mxu0 0.0
  %1362 = vmatpush1.msra.mxu0 0.0
  %1363 = vmatprep.subr.mxu0 0.0
  %1364 = vmatpush1.msra.mxu0 0.0
  %1365 = vmatprep.subr.mxu0 0.0
  %1366 = vmatpush1.msra.mxu0 0.0
  %1367 = vmatprep.subr.mxu0 0.0
  %1368 = vmatpush1.msra.mxu0 0.0
  %1369 = vmatprep.subr.mxu0 0.0
  %1370 = vmatpush1.msra.mxu0 0.0
  %1371 = vmatprep.subr.mxu0 0.0
  %1372 = vmatpush1.msra.mxu0 0.0
  %1373 = vmatprep.subr.mxu0 0.0
  %1374 = vmatpush1.msra.mxu0 0.0
  %1375 = vmatprep.subr.mxu0 0.0
  %1376 = vmatpush1.msra.mxu0 0.0
  %1377 = vmatprep.subr.mxu0 0.0
  %1378 = vmatpush1.msra.mxu0 0.0
  %1379 = vmatprep.subr.mxu0 0.0
  %1380 = vmatpush1.msra.mxu0 0.0
  %1381 = vmatprep.subr.mxu0 0.0
  %1382 = vmatpush1.msra.mxu0 0.0
  %1383 = vmatprep.subr.mxu0 0.0
  %1384 = vmatpush1.msra.mxu0 0.0
  %1385 = vmatprep.subr.mxu0 0.0
  %1386 = vmatpush1.msra.mxu0 0.0
  %1387 = vmatprep.subr.mxu0 0.0
  %1388 = vmatpush1.msra.mxu0 0.0
  %1389 = vmatprep.subr.mxu0 0.0
  %1390 = vmatpush1.msra.mxu0 0.0
  %1391 = vmatprep.subr.mxu0 0.0
  %1392 = vmatpush1.msra.mxu0 0.0
  %1393 = vmatprep.subr.mxu0 0.0
  %1394 = vmatpush1.msra.mxu0 0.0
  %1395 = vmatprep.subr.mxu0 0.0
  %1396 = vmatpush1.msra.mxu0 0.0
  %1397 = vmatprep.subr.mxu0 0.0
  %1398 = vmatpush1.msra.mxu0 0.0
  %1399 = vmatprep.subr.mxu0 0.0
  %1400 = vmatpush1.msra.mxu0 0.0
  %1401 = vmatprep.subr.mxu0 0.0
  %1402 = vmatpush1.msra.mxu0 0.0
  %1403 = vmatprep.subr.mxu0 0.0
  %1404 = vmatpush1.msra.mxu0 0.0
  %1405 = vmatprep.mubr.f32.mxu0 0.0
  %1406 = vmatmul.mubr.f32.gmra.mrb[0].mxu0 %v1339
  %v1407 = vpop.f32.mrb[0].mxu0
  %v1408 = vadd.f32 0.0, %v1407
  %v1409 = vpop.f32.mrb[0].mxu0
  %1410 = vdwg.mxu0
  %1411 = vmatprep.subr.mxu0 0.0
  %1412 = vmatpush1.msra.mxu0 %v1231
  %1413 = vmatprep.subr.mxu0 0.0
  %1414 = vmatpush1.msra.mxu0 %v1232
  %1415 = vmatprep.subr.mxu0 0.0
  %1416 = vmatpush1.msra.mxu0 %v1233
  %1417 = vmatprep.subr.mxu0 0.0
  %1418 = vmatpush1.msra.mxu0 %v1234
  %1419 = vmatprep.subr.mxu0 0.0
  %1420 = vmatpush1.msra.mxu0 %v1235
  %1421 = vmatprep.subr.mxu0 0.0
  %1422 = vmatpush1.msra.mxu0 %v1236
  %1423 = vmatprep.subr.mxu0 0.0
  %1424 = vmatpush1.msra.mxu0 %v1237
  %1425 = vmatprep.subr.mxu0 0.0
  %1426 = vmatpush1.msra.mxu0 %v1238
  %1427 = vmatprep.subr.mxu0 0.0
  %1428 = vmatpush1.msra.mxu0 %v1239
  %1429 = vmatprep.subr.mxu0 0.0
  %1430 = vmatpush1.msra.mxu0 %v1240
  %1431 = vmatprep.subr.mxu0 0.0
  %1432 = vmatpush1.msra.mxu0 %v1241
  %1433 = vmatprep.subr.mxu0 0.0
  %1434 = vmatpush1.msra.mxu0 %v1242
  %1435 = vmatprep.subr.mxu0 0.0
  %1436 = vmatpush1.msra.mxu0 %v1243
  %1437 = vmatprep.subr.mxu0 0.0
  %1438 = vmatpush1.msra.mxu0 %v1244
  %1439 = vmatprep.subr.mxu0 0.0
  %1440 = vmatpush1.msra.mxu0 %v1245
  %1441 = vmatprep.subr.mxu0 0.0
  %1442 = vmatpush1.msra.mxu0 %v1246
  %1443 = vmatprep.subr.mxu0 0.0
  %1444 = vmatpush1.msra.mxu0 0.0
  %1445 = vmatprep.subr.mxu0 0.0
  %1446 = vmatpush1.msra.mxu0 0.0
  %1447 = vmatprep.subr.mxu0 0.0
  %1448 = vmatpush1.msra.mxu0 0.0
  %1449 = vmatprep.subr.mxu0 0.0
  %1450 = vmatpush1.msra.mxu0 0.0
  %1451 = vmatprep.subr.mxu0 0.0
  %1452 = vmatpush1.msra.mxu0 0.0
  %1453 = vmatprep.subr.mxu0 0.0
  %1454 = vmatpush1.msra.mxu0 0.0
  %1455 = vmatprep.subr.mxu0 0.0
  %1456 = vmatpush1.msra.mxu0 0.0
  %1457 = vmatprep.subr.mxu0 0.0
  %1458 = vmatpush1.msra.mxu0 0.0
  %1459 = vmatprep.subr.mxu0 0.0
  %1460 = vmatpush1.msra.mxu0 0.0
  %1461 = vmatprep.subr.mxu0 0.0
  %1462 = vmatpush1.msra.mxu0 0.0
  %1463 = vmatprep.subr.mxu0 0.0
  %1464 = vmatpush1.msra.mxu0 0.0
  %1465 = vmatprep.subr.mxu0 0.0
  %1466 = vmatpush1.msra.mxu0 0.0
  %1467 = vmatprep.subr.mxu0 0.0
  %1468 = vmatpush1.msra.mxu0 0.0
  %1469 = vmatprep.subr.mxu0 0.0
  %1470 = vmatpush1.msra.mxu0 0.0
  %1471 = vmatprep.subr.mxu0 0.0
  %1472 = vmatpush1.msra.mxu0 0.0
  %1473 = vmatprep.subr.mxu0 0.0
  %1474 = vmatpush1.msra.mxu0 0.0
  %1475 = vmatprep.mubr.f32.mxu0 0.0
  %1476 = vmatmul.mubr.f32.gmra.mrb[0].mxu0 %v1408
  %v1477 = vpop.f32.mrb[0].mxu0
  %v1478 = vadd.f32 0.0, %v1477
  %v1479 = vpop.f32.mrb[0].mxu0
  %1480 = vdwg.mxu0
  %v1481 = vlaneseq
  %v1482 = vand.u32 %v1481, 127
  %vm1483 = vcmp.lt.s32.totalorder %v1482, 5
  %v1484 = vsel %vm1483, %v1478, -3e+38
  %1485 = vmax.xlane.f32.xlu0 %v1484
  %v1486 = vpop.xlane.xlu0 %1485
  %vm1487 = vcmp.eq.f32.partialorder %v1484, %v1486
  %v1488 = vsel %vm1487, %v1482, 128
  %v1489 = vand.u32 %v1488, 65535
  %v1490 = vshra.s32 %v1488, 16
  %v1491 = vcvt.s32.f32 %v1489
  %v1492 = vcvt.s32.f32 %v1490
  %1493 = vmin.xlane.f32.xlu0 %v1492
  %v1494 = vpop.xlane.xlu0 %1493
  %vm1495 = vcmp.eq.f32.partialorder %v1492, %v1494
  %v1496 = vsel %vm1495, %v1491, inf
  %1497 = vmin.xlane.f32.xlu0 %v1496
  %v1498 = vpop.xlane.xlu0 %1497
  %v1499 = vcvt.f32.s32 %v1498
  %v1500 = vcvt.f32.s32 %v1494
  %v1501 = vshll.u32 %v1500, 16
  %v1502 = vadd.s32 %v1501, %v1499
  %1503 = vst [vmem:[%s1] sm:$0xff] %v1502
  // Predicated region
  $region6: #{_graph_cls_ggnn_impl.1} parent=0 // pred_check
    _
  $region7: #{_graph_cls_ggnn_impl.1} parent=0 // pred_check_branch
    %1505 = sbr.rel (0) target = $region9
  $region8: #{_graph_cls_ggnn_impl.1} parent=0 // pred_region
    _
  $region9: #{_graph_cls_ggnn_impl.1} parent=0 // pred_fallthru
    _
  // Predicated region
  $region10: #{_graph_cls_ggnn_impl.1} parent=0 // pred_check
    _
  $region11: #{_graph_cls_ggnn_impl.1} parent=0 // pred_check_branch
    %1507 = sbr.rel (0) target = $region13
  $region12: #{_graph_cls_ggnn_impl.1} parent=0 // pred_region
    _
  $region13: #{_graph_cls_ggnn_impl.1} parent=0 // pred_fallthru
    _

</llo_original>
